<compile_context>
chip_gen: v7x
topology: tpu7x:2x2x1
jax: 0.10.0
libtpu: 0.0.40
codegen_flags: <defaults>
</compile_context>

<pallas_src>
import jax
import jax.numpy as jnp
from jax.experimental import pallas as pl
from jax.experimental.pallas import tpu as pltpu


def mlp_kernel(x_ref, w1_ref, b1_ref, w2_ref, b2_ref, o_ref):
    # x tile arrives in bf16 (halves the dominant x HBM traffic). Upcast once
    # to f32 for the residual/epilogue; feed bf16 straight to the MXU.
    x_bf16 = x_ref[...]                                     # (TB, D) bf16
    x_f32 = x_bf16.astype(jnp.float32)

    # fc1 on the MXU: bf16 operands, f32 accumulation.
    h = jnp.dot(x_bf16, w1_ref[...], preferred_element_type=jnp.float32)
    # Bias + ReLU in f32 on the VPU (lane-dense; keeps v5e off bf16 emulation).
    h = jnp.maximum(h + b1_ref[...], 0.0)
    # Dropout with p=0.0 is the identity -> no-op.

    # fc2 on the MXU: bf16 operands, f32 accumulation.
    out = jnp.dot(h.astype(jnp.bfloat16), w2_ref[...],
                  preferred_element_type=jnp.float32)
    # Bias + residual in f32, then a single lane-dense bf16 store.
    o_ref[...] = (out + b2_ref[...] + x_f32).astype(o_ref.dtype)


def mlp_forward(x, w1_bf16, b1, w2_bf16, b2, *, tb=512):
    """x: (B, D) bf16, weights pre-transposed to (in, out) in bfloat16,
    biases (1, H) f32. Returns (B, H) bf16. Requires D == H (residual) and
    B % tb == 0; for v7x keep B // tb even so both TensorCores get work."""
    B, D = x.shape
    H = w1_bf16.shape[1]
    assert D == H, "residual add requires input_dim == hidden_dim"
    tb = min(tb, B)
    assert B % tb == 0, "batch must be a multiple of the batch tile"
    assert tb % 8 == 0, "batch tile must be sublane-aligned"
    assert D % 128 == 0 and H % 128 == 0, "feature dims must be lane-dense"

    grid = (B // tb,)

    # Weights/biases never change across the grid -> single resident buffer.
    resident = pl.Buffered(1)

    flops = 4 * B * D * H                       # two (B,D)x(D,H) matmuls
    bytes_accessed = (B * D * 2                 # x in (bf16)
                      + B * H * 2               # out (bf16)
                      + (D * H + H * H) * 2     # weights (bf16)
                      + 2 * H * 4)              # biases (f32)

    return pl.pallas_call(
        mlp_kernel,
        out_shape=jax.ShapeDtypeStruct((B, H), jnp.bfloat16),
        grid_spec=pltpu.PrefetchScalarGridSpec(
            num_scalar_prefetch=0,
            grid=grid,
            in_specs=[
                # x: one batch tile per grid step (double-buffered DMA).
                pl.BlockSpec((tb, D), lambda i: (i, 0)),
                # Weights / biases: constant index_map -> resident in VMEM,
                # single buffer each.
                pl.BlockSpec((D, H), lambda i: (0, 0), pipeline_mode=resident),
                pl.BlockSpec((1, H), lambda i: (0, 0), pipeline_mode=resident),
                pl.BlockSpec((H, H), lambda i: (0, 0), pipeline_mode=resident),
                pl.BlockSpec((1, H), lambda i: (0, 0), pipeline_mode=resident),
            ],
            out_specs=pl.BlockSpec((tb, H), lambda i: (i, 0)),
        ),
        compiler_params=pltpu.CompilerParams(
            # Independent batch tiles: shard across both TCs on v7x.
            dimension_semantics=("parallel",),
            # Explicit budget; leaves headroom on v7x's 64 MiB physical VMEM.
            vmem_limit_bytes=32 * 1024 * 1024,
        ),
        cost_estimate=pl.CostEstimate(flops=flops, transcendentals=0,
                                      bytes_accessed=bytes_accessed),
    )(x, w1_bf16, b1, w2_bf16, b2)


def reference_mlp(x_bf16, w1_bf16, b1, w2_bf16, b2):
    # Mirror the kernel's mixed precision (bf16 matmul operands / bf16 I/O,
    # f32 accumulation, f32 bias/ReLU/residual) so the comparison isolates the
    # Pallas lowering.
    x_f32 = x_bf16.astype(jnp.float32)
    h = jnp.dot(x_bf16, w1_bf16, preferred_element_type=jnp.float32)
    h = jnp.maximum(h + b1, 0.0)
    out = jnp.dot(h.astype(jnp.bfloat16), w2_bf16,
                  preferred_element_type=jnp.float32)
    return (out + b2 + x_f32).astype(jnp.bfloat16)


if __name__ == "__main__":
    # Lane-dense, MXU-friendly shapes: D=H=128 (multiple of 128 lanes).
    # batch=1024 with a 512-row tile -> grid length 2 (even), so v7x's two
    # TensorCores each take one tile; still only ~0.5 MiB of data total.
    input_dim = 128
    hidden_dim = 128
    batch = 1024
    batch_tile = 512

    key = jax.random.PRNGKey(0)
    kx, k1, kb1, k2, kb2 = jax.random.split(key, 5)

    # bf16 activations in / out (mem-bound kernel -> halve HBM traffic),
    # bf16 weights pre-transposed to (in, out), f32 biases for the VPU epilogue.
    x = jax.random.normal(kx, (batch, input_dim),
                          dtype=jnp.float32).astype(jnp.bfloat16)
    w1 = (jax.random.normal(k1, (input_dim, hidden_dim), dtype=jnp.float32)
          * 0.1).astype(jnp.bfloat16)
    b1 = jax.random.normal(kb1, (1, hidden_dim), dtype=jnp.float32) * 0.1
    w2 = (jax.random.normal(k2, (hidden_dim, hidden_dim), dtype=jnp.float32)
          * 0.1).astype(jnp.bfloat16)
    b2 = jax.random.normal(kb2, (1, hidden_dim), dtype=jnp.float32) * 0.1

    out = mlp_forward(x, w1, b1, w2, b2, tb=batch_tile)
    out = jax.block_until_ready(out)

    ref = reference_mlp(x, w1, b1, w2, b2)
    assert out.shape == ref.shape
    assert out.dtype == jnp.bfloat16
    assert jnp.allclose(out.astype(jnp.float32), ref.astype(jnp.float32),
                        atol=2e-2, rtol=2e-2), "mismatch vs JAX reference"

    print("KERNEL_OK")
</pallas_src>

<mosaic_0001>
module attributes {stable_mosaic.version = 11 : i64} {
  func.func @mlp_kernel(%arg0: i32, %arg1: memref<512x128xbf16, #tpu.memory_space<vmem>>, %arg2: memref<128x128xbf16, #tpu.memory_space<vmem>>, %arg3: memref<1x128xf32, #tpu.memory_space<vmem>>, %arg4: memref<128x128xbf16, #tpu.memory_space<vmem>>, %arg5: memref<1x128xf32, #tpu.memory_space<vmem>>, %arg6: memref<512x128xbf16, #tpu.memory_space<vmem>>) attributes {dimension_semantics = [#tpu.dimension_semantics<parallel>], iteration_bounds = array<i64: 2>, scalar_prefetch = 0 : i64, scratch_operands = 0 : i64, tpu.core_type = #tpu.core_type<tc>, window_params = [{transform_indices = @transform_0, window_bounds = array<i64: 512, 128>}, {pipeline_mode = #tpu.pipeline_mode<synchronous>, transform_indices = @transform_1, window_bounds = array<i64: 128, 128>}, {pipeline_mode = #tpu.pipeline_mode<synchronous>, transform_indices = @transform_2, window_bounds = array<i64: 1, 128>}, {pipeline_mode = #tpu.pipeline_mode<synchronous>, transform_indices = @transform_3, window_bounds = array<i64: 128, 128>}, {pipeline_mode = #tpu.pipeline_mode<synchronous>, transform_indices = @transform_4, window_bounds = array<i64: 1, 128>}, {transform_indices = @transform_5, window_bounds = array<i64: 512, 128>}]} {
    %c0 = arith.constant 0 : index
    %c0_0 = arith.constant 0 : index
    %0 = vector.load %arg1[%c0, %c0_0] : memref<512x128xbf16, #tpu.memory_space<vmem>>, vector<512x128xbf16>
    %1 = arith.extf %0 : vector<512x128xbf16> to vector<512x128xf32>
    %c0_1 = arith.constant 0 : index
    %c0_2 = arith.constant 0 : index
    %2 = vector.load %arg2[%c0_1, %c0_2] : memref<128x128xbf16, #tpu.memory_space<vmem>>, vector<128x128xbf16>
    %cst = arith.constant dense<0.000000e+00> : vector<512x128xf32>
    %3 = tpu.matmul %0, %2, %cst {dimension_numbers = #tpu.dot_dimension_numbers<[1], [0], [0], [1], [0, 0, 1, 1], [], []>} : vector<512x128xbf16>, vector<128x128xbf16>, vector<512x128xf32> -> vector<512x128xf32>
    %c0_3 = arith.constant 0 : index
    %c0_4 = arith.constant 0 : index
    %4 = vector.load %arg3[%c0_3, %c0_4] : memref<1x128xf32, #tpu.memory_space<vmem>>, vector<1x128xf32>
    %5 = vector.broadcast %4 : vector<1x128xf32> to vector<512x128xf32>
    %6 = arith.addf %3, %5 : vector<512x128xf32>
    %cst_5 = arith.constant 0.000000e+00 : f32
    %7 = vector.broadcast %cst_5 : f32 to vector<512x128xf32>
    %8 = arith.maximumf %6, %7 : vector<512x128xf32>
    %9 = arith.truncf %8 : vector<512x128xf32> to vector<512x128xbf16>
    %c0_6 = arith.constant 0 : index
    %c0_7 = arith.constant 0 : index
    %10 = vector.load %arg4[%c0_6, %c0_7] : memref<128x128xbf16, #tpu.memory_space<vmem>>, vector<128x128xbf16>
    %cst_8 = arith.constant dense<0.000000e+00> : vector<512x128xf32>
    %11 = tpu.matmul %9, %10, %cst_8 {dimension_numbers = #tpu.dot_dimension_numbers<[1], [0], [0], [1], [0, 0, 1, 1], [], []>} : vector<512x128xbf16>, vector<128x128xbf16>, vector<512x128xf32> -> vector<512x128xf32>
    %c0_9 = arith.constant 0 : index
    %c0_10 = arith.constant 0 : index
    %12 = vector.load %arg5[%c0_9, %c0_10] : memref<1x128xf32, #tpu.memory_space<vmem>>, vector<1x128xf32>
    %13 = vector.broadcast %12 : vector<1x128xf32> to vector<512x128xf32>
    %14 = arith.addf %11, %13 : vector<512x128xf32>
    %15 = arith.addf %14, %1 : vector<512x128xf32>
    %16 = arith.truncf %15 : vector<512x128xf32> to vector<512x128xbf16>
    %c0_11 = arith.constant 0 : index
    %c0_12 = arith.constant 0 : index
    %17 = vector.load %arg6[%c0_11, %c0_12] : memref<512x128xbf16, #tpu.memory_space<vmem>>, vector<512x128xbf16>
    tpu.vector_store %arg6[%c0_11, %c0_12], %16 {strides = array<i32>} : memref<512x128xbf16, #tpu.memory_space<vmem>>, vector<512x128xbf16>,
    return
  }
  func.func @transform_0(%arg0: i32) -> (i32, i32) {
    %c0_i32 = arith.constant 0 : i32
    %c0_i32_0 = arith.constant 0 : i32
    return %arg0, %c0_i32 : i32, i32
  }
  func.func @transform_1(%arg0: i32) -> (i32, i32) {
    %c0_i32 = arith.constant 0 : i32
    %c0_i32_0 = arith.constant 0 : i32
    %c0_i32_1 = arith.constant 0 : i32
    return %c0_i32, %c0_i32_0 : i32, i32
  }
  func.func @transform_2(%arg0: i32) -> (i32, i32) {
    %c0_i32 = arith.constant 0 : i32
    %c0_i32_0 = arith.constant 0 : i32
    %c0_i32_1 = arith.constant 0 : i32
    return %c0_i32, %c0_i32_0 : i32, i32
  }
  func.func @transform_3(%arg0: i32) -> (i32, i32) {
    %c0_i32 = arith.constant 0 : i32
    %c0_i32_0 = arith.constant 0 : i32
    %c0_i32_1 = arith.constant 0 : i32
    return %c0_i32, %c0_i32_0 : i32, i32
  }
  func.func @transform_4(%arg0: i32) -> (i32, i32) {
    %c0_i32 = arith.constant 0 : i32
    %c0_i32_0 = arith.constant 0 : i32
    %c0_i32_1 = arith.constant 0 : i32
    return %c0_i32, %c0_i32_0 : i32, i32
  }
  func.func @transform_5(%arg0: i32) -> (i32, i32) {
    %c0_i32 = arith.constant 0 : i32
    %c0_i32_0 = arith.constant 0 : i32
    return %arg0, %c0_i32 : i32, i32
  }
}

</mosaic_0001>

<llo_original>
// kernel: tpu_custom_call.1
$region0: #{tpu_custom_call.1}
  #allocation0 [shape = 'u32[]', space=smem, size = 0x4, offset = 0x4, fixed_abs, tag = 'smem constant byte address 0x4 - core index']
  #allocation1 [shape = 'u32[144,128]{1,0:T(1,128)}', space=vmem, size = 0x12000, scoped, tag = 'internal scratch']
  %s0 = inlined_call_operand.hbm [shape: bf16[1024,128], index: 0, kind: input, shape index: {}]
  %s1 = inlined_call_operand.hbm [shape: bf16[128,128], index: 1, kind: input, shape index: {}]
  %s2 = inlined_call_operand.vmem [shape: f32[1,128], index: 2, kind: input, shape index: {}]
  %s3 = inlined_call_operand.hbm [shape: bf16[128,128], index: 3, kind: input, shape index: {}]
  %s4 = inlined_call_operand.vmem [shape: f32[1,128], index: 4, kind: input, shape index: {}]
  %s5 = inlined_call_operand.hbm [shape: bf16[1024,128], index: 5, kind: output, shape index: {}]
  %s6 = sld [smem:[#allocation0]]
  $region65: #{tpu_custom_call.1} parent=0
    _
  %s8 = ssub.s32 1, %s6
  %s9 = scalar_select 0, %s8, %s6
  $region1: #{tpu_custom_call.1} parent=0
    #allocation2 [shape = 'u8[262144]{0}', space=vmem, size = 0x40000, scoped, tag = 'input window, operand 0']
    #allocation3 [shape = 's32[2]{0}', space=sflag, size = 0x8, scoped, tag = 'scoped memory for tpu_custom_call.1']
    #allocation4 [shape = 's32[2]{0}', space=sflag, size = 0x8, scoped, tag = 'scoped memory for tpu_custom_call.1']
    #allocation5 [shape = 'u8[32768]{0}', space=vmem, size = 0x8000, scoped, tag = 'input window, operand 1, single buffered']
    #allocation6 [shape = 's32[1]{0}', space=sflag, size = 0x4, scoped, tag = 'scoped memory for tpu_custom_call.1']
    #allocation7 [shape = 'u8[32768]{0}', space=vmem, size = 0x8000, scoped, tag = 'input window, operand 3, single buffered']
    #allocation8 [shape = 'u8[262144]{0}', space=vmem, size = 0x40000, scoped, tag = 'output window, operand 0']
    %10 = vsyncpa [#allocation3], 0
    %s11 = scalar_lea.sflag [#allocation3], 1
    %12 = vsyncpa %s11, 0
    %13 = vsyncpa [#allocation6], 0
    %14 = vsyncpa [#allocation4], 0
    %s15 = scalar_lea.sflag [#allocation4], 1
    %16 = vsyncpa %s15, 0
    loop: start=0, step=1, limit=4
    $region2: #{tpu_custom_call.1} parent=1 // loop_pre_header
      _
    $region3: #{tpu_custom_call.1} parent=1 // loop_header
      %s18 = sphi 0, %s22
      %p19 = scmp.ge.s32.totalorder %s18, 4
      %s28 = sphi 0, %s30
      %s31 = sphi 0, %s28
      %s32 = sphi 0, %s31
      %s48 = sphi 0, %s32
      %s52 = sphi 0, %s52
      %s54 = sphi 0, %s52
      %s55 = sphi 0, %s54
      %s69 = sphi 0, %s55
      %s73 = sphi 0, %s73
      %s75 = sphi 0, %s73
      %s76 = sphi 0, %s75
      %s90 = sphi 0, %s76
      %s94 = sphi 0, %s94
      %s96 = sphi 0, %s94
      %s97 = sphi 0, %s96
      %s111 = sphi 0, %s97
      %s115 = sphi 0, %s115
      %s117 = sphi 0, %s115
      %s118 = sphi 0, %s117
      %s132 = sphi 0, %s118
      %s138 = sphi 0, %s140
      %s141 = sphi 0, %s138
      %s142 = sphi 0, %s141
      %s158 = sphi 0, %s142
    $region4: #{tpu_custom_call.1} parent=1 // loop_header_branch
      %21 = sbr.rel (%p19) target = $region8
    $region5: #{tpu_custom_call.1} parent=1 // loop_body
      %s23 = ssub.s32 %s18, 1
      %s24 = ssub.s32 %s18, 2
      %s25 = sadd.s32 %s18, 1
      %s26 = ssub.s32 %s18, %s25
      %p27 = scmp.eq.s32.totalorder %s26, 0
      %s29 = sadd.s32 %s28, 1
      %s30 = scalar_select %p27, %s28, %s29
      %p33 = pneg %p27
      %p34 = scmp.eq.s32.totalorder %s18, 1
      %p35 = por %p33, %p34
      %p36 = scmp.ne.s32.totalorder %s28, %s31
      %p37 = scmp.eq.s32.totalorder %s18, 0
      %p38 = por %p36, %p37
      %p39 = scmp.ne.s32.totalorder %s28, %s31
      %p40 = scmp.eq.s32.totalorder %s23, 1
      %p41 = por %p39, %p40
      %p42 = scmp.ne.s32.totalorder %s31, %s32
      %p43 = scmp.eq.s32.totalorder %s23, 0
      %p44 = por %p42, %p43
      %p45 = scmp.ne.s32.totalorder %s31, %s32
      %p46 = scmp.eq.s32.totalorder %s24, 1
      %p47 = por %p45, %p46
      %p49 = scmp.ne.s32.totalorder %s32, %s48
      %p50 = scmp.eq.s32.totalorder %s24, 0
      %p51 = por %p49, %p50
      %s53 = sadd.s32 %s52, 1
      %p56 = scmp.eq.s32.totalorder %s18, 1
      %p57 = scmp.ne.s32.totalorder %s52, %s54
      %p58 = scmp.eq.s32.totalorder %s18, 0
      %p59 = por %p57, %p58
      %p60 = scmp.ne.s32.totalorder %s52, %s54
      %p61 = scmp.eq.s32.totalorder %s23, 1
      %p62 = por %p60, %p61
      %p63 = scmp.ne.s32.totalorder %s54, %s55
      %p64 = scmp.eq.s32.totalorder %s23, 0
      %p65 = por %p63, %p64
      %p66 = scmp.ne.s32.totalorder %s54, %s55
      %p67 = scmp.eq.s32.totalorder %s24, 1
      %p68 = por %p66, %p67
      %p70 = scmp.ne.s32.totalorder %s55, %s69
      %p71 = scmp.eq.s32.totalorder %s24, 0
      %p72 = por %p70, %p71
      %s74 = sadd.s32 %s73, 1
      %p77 = scmp.eq.s32.totalorder %s18, 1
      %p78 = scmp.ne.s32.totalorder %s73, %s75
      %p79 = scmp.eq.s32.totalorder %s18, 0
      %p80 = por %p78, %p79
      %p81 = scmp.ne.s32.totalorder %s73, %s75
      %p82 = scmp.eq.s32.totalorder %s23, 1
      %p83 = por %p81, %p82
      %p84 = scmp.ne.s32.totalorder %s75, %s76
      %p85 = scmp.eq.s32.totalorder %s23, 0
      %p86 = por %p84, %p85
      %p87 = scmp.ne.s32.totalorder %s75, %s76
      %p88 = scmp.eq.s32.totalorder %s24, 1
      %p89 = por %p87, %p88
      %p91 = scmp.ne.s32.totalorder %s76, %s90
      %p92 = scmp.eq.s32.totalorder %s24, 0
      %p93 = por %p91, %p92
      %s95 = sadd.s32 %s94, 1
      %p98 = scmp.eq.s32.totalorder %s18, 1
      %p99 = scmp.ne.s32.totalorder %s94, %s96
      %p100 = scmp.eq.s32.totalorder %s18, 0
      %p101 = por %p99, %p100
      %p102 = scmp.ne.s32.totalorder %s94, %s96
      %p103 = scmp.eq.s32.totalorder %s23, 1
      %p104 = por %p102, %p103
      %p105 = scmp.ne.s32.totalorder %s96, %s97
      %p106 = scmp.eq.s32.totalorder %s23, 0
      %p107 = por %p105, %p106
      %p108 = scmp.ne.s32.totalorder %s96, %s97
      %p109 = scmp.eq.s32.totalorder %s24, 1
      %p110 = por %p108, %p109
      %p112 = scmp.ne.s32.totalorder %s97, %s111
      %p113 = scmp.eq.s32.totalorder %s24, 0
      %p114 = por %p112, %p113
      %s116 = sadd.s32 %s115, 1
      %p119 = scmp.eq.s32.totalorder %s18, 1
      %p120 = scmp.ne.s32.totalorder %s115, %s117
      %p121 = scmp.eq.s32.totalorder %s18, 0
      %p122 = por %p120, %p121
      %p123 = scmp.ne.s32.totalorder %s115, %s117
      %p124 = scmp.eq.s32.totalorder %s23, 1
      %p125 = por %p123, %p124
      %p126 = scmp.ne.s32.totalorder %s117, %s118
      %p127 = scmp.eq.s32.totalorder %s23, 0
      %p128 = por %p126, %p127
      %p129 = scmp.ne.s32.totalorder %s117, %s118
      %p130 = scmp.eq.s32.totalorder %s24, 1
      %p131 = por %p129, %p130
      %p133 = scmp.ne.s32.totalorder %s118, %s132
      %p134 = scmp.eq.s32.totalorder %s24, 0
      %p135 = por %p133, %p134
      %s136 = ssub.s32 %s18, %s25
      %p137 = scmp.eq.s32.totalorder %s136, 0
      %s139 = sadd.s32 %s138, 1
      %s140 = scalar_select %p137, %s138, %s139
      %p143 = pneg %p137
      %p144 = scmp.eq.s32.totalorder %s18, 1
      %p145 = por %p143, %p144
      %p146 = scmp.ne.s32.totalorder %s138, %s141
      %p147 = scmp.eq.s32.totalorder %s18, 0
      %p148 = por %p146, %p147
      %p149 = scmp.ne.s32.totalorder %s138, %s141
      %p150 = scmp.eq.s32.totalorder %s23, 1
      %p151 = por %p149, %p150
      %p152 = scmp.ne.s32.totalorder %s141, %s142
      %p153 = scmp.eq.s32.totalorder %s23, 0
      %p154 = por %p152, %p153
      %p155 = scmp.ne.s32.totalorder %s141, %s142
      %p156 = scmp.eq.s32.totalorder %s24, 1
      %p157 = por %p155, %p156
      %p159 = scmp.ne.s32.totalorder %s142, %s158
      %p160 = scmp.eq.s32.totalorder %s24, 0
      %p161 = por %p159, %p160
      %p162 = scmp.le.s32.totalorder 1, %s18
      %p163 = scmp.lt.s32.totalorder %s18, 3
      %p164 = pnand %p162, %p163
      %p165 = pneg %p164
      // Predicated region
      $region9: #{tpu_custom_call.1} parent=5 // pred_check
        _
      $region10: #{tpu_custom_call.1} parent=5 // pred_check_branch
        %167 = sbr.rel (%p164) target = $region12
      $region11: #{tpu_custom_call.1} parent=5 // pred_region
        %s168 = ssub.s32 %s18, 1
        // Predicated region
        $region13: #{tpu_custom_call.1} parent=11 // pred_check
          %p169 = pneg %p65
        $region14: #{tpu_custom_call.1} parent=11 // pred_check_branch
          %171 = sbr.rel (%p169) target = $region16
        $region15: #{tpu_custom_call.1} parent=11 // pred_region
          %s173 = ssub.s32 1024, 1024
          %174 = vsyncadd [#allocation6], %s173
          %s175 = sshll.u32 [#allocation5], 4
          %s176 = int_to_ptr.vmem [resolvable:$true] %s175
          %181 = dma.hbm_to_vmem [thread:$0]  %s1, 1024, %s176, [#allocation6], 64, 64, 4
        $region16: #{tpu_custom_call.1} parent=11 // pred_fallthru
          _
        // Predicated region
        $region17: #{tpu_custom_call.1} parent=11 // pred_check
          %p182 = pneg %p86
        $region18: #{tpu_custom_call.1} parent=11 // pred_check_branch
          %184 = sbr.rel (%p182) target = $region20
        $region19: #{tpu_custom_call.1} parent=11 // pred_region
          _
        $region20: #{tpu_custom_call.1} parent=11 // pred_fallthru
          _
        // Predicated region
        $region21: #{tpu_custom_call.1} parent=11 // pred_check
          %p185 = pneg %p107
        $region22: #{tpu_custom_call.1} parent=11 // pred_check_branch
          %187 = sbr.rel (%p185) target = $region24
        $region23: #{tpu_custom_call.1} parent=11 // pred_region
          %s189 = ssub.s32 1024, 1024
          %190 = vsyncadd [#allocation6], %s189
          %s191 = sshll.u32 [#allocation7], 4
          %s192 = int_to_ptr.vmem [resolvable:$true] %s191
          %197 = dma.hbm_to_vmem [thread:$0]  %s3, 1024, %s192, [#allocation6], 64, 64, 4
        $region24: #{tpu_custom_call.1} parent=11 // pred_fallthru
          _
        // Predicated region
        $region25: #{tpu_custom_call.1} parent=11 // pred_check
          %p198 = pneg %p128
        $region26: #{tpu_custom_call.1} parent=11 // pred_check_branch
          %200 = sbr.rel (%p198) target = $region28
        $region27: #{tpu_custom_call.1} parent=11 // pred_region
          _
        $region28: #{tpu_custom_call.1} parent=11 // pred_fallthru
          _
      $region12: #{tpu_custom_call.1} parent=5 // pred_fallthru
        _
      %p201 = scmp.lt.s32.totalorder %s18, 2
      // Predicated region
      $region29: #{tpu_custom_call.1} parent=5 // pred_check
        %p202 = pneg %p201
      $region30: #{tpu_custom_call.1} parent=5 // pred_check_branch
        %204 = sbr.rel (%p202) target = $region32
      $region31: #{tpu_custom_call.1} parent=5 // pred_region
        // Predicated region
        $region33: #{tpu_custom_call.1} parent=31 // pred_check
          %p205 = pneg %p38
        $region34: #{tpu_custom_call.1} parent=31 // pred_check_branch
          %207 = sbr.rel (%p205) target = $region36
        $region35: #{tpu_custom_call.1} parent=31 // pred_region
          %s208 = sand.u32 %s28, 1
          %s209 = scalar_lea.sflag [#allocation3], %s208
          %s210 = sand.u32 %s28, 1
          %s211 = smul.addr %s210, 256
          %s212 = scalar_lea.vmem [#allocation2], %s211
          %s213 = smul.u32 64, %s18
          %s215 = ssub.s32 4096, 4096
          %216 = vsyncadd %s209, %s215
          %s217 = smul.addr %s213, 64
          %s218 = scalar_lea.hbm %s0, %s217
          %s219 = sshll.u32 %s212, 4
          %s220 = int_to_ptr.vmem [resolvable:$true] %s219
          %225 = dma.hbm_to_vmem [thread:$0]  %s218, 4096, %s220, %s209, 64, 64, 4
        $region36: #{tpu_custom_call.1} parent=31 // pred_fallthru
          _
      $region32: #{tpu_custom_call.1} parent=5 // pred_fallthru
        _
      %p226 = scmp.le.s32.totalorder 1, %s18
      %p227 = scmp.lt.s32.totalorder %s18, 3
      %p228 = pnand %p226, %p227
      %p229 = pneg %p228
      // Predicated region
      $region37: #{tpu_custom_call.1} parent=5 // pred_check
        _
      $region38: #{tpu_custom_call.1} parent=5 // pred_check_branch
        %231 = sbr.rel (%p228) target = $region40
      $region39: #{tpu_custom_call.1} parent=5 // pred_region
        %s232 = ssub.s32 %s18, 1
        %s233 = sand.u32 %s31, 1
        %s234 = scalar_lea.sflag [#allocation3], %s233
        %s235 = sand.u32 %s31, 1
        %s236 = smul.addr %s235, 256
        %s237 = scalar_lea.vmem [#allocation2], %s236
        // Predicated region
        $region41: #{tpu_custom_call.1} parent=39 // pred_check
          %p238 = pneg %p44
        $region42: #{tpu_custom_call.1} parent=39 // pred_check_branch
          %240 = sbr.rel (%p238) target = $region44
        $region43: #{tpu_custom_call.1} parent=39 // pred_region
          %241 = dma.done %s234, 4096
        $region44: #{tpu_custom_call.1} parent=39 // pred_fallthru
          _
        // Predicated region
        $region45: #{tpu_custom_call.1} parent=39 // pred_check
          %p242 = pneg %p65
        $region46: #{tpu_custom_call.1} parent=39 // pred_check_branch
          %244 = sbr.rel (%p242) target = $region48
        $region47: #{tpu_custom_call.1} parent=39 // pred_region
          %245 = dma.done [#allocation6], 1024
        $region48: #{tpu_custom_call.1} parent=39 // pred_fallthru
          _
        // Predicated region
        $region49: #{tpu_custom_call.1} parent=39 // pred_check
          %p246 = pneg %p107
        $region50: #{tpu_custom_call.1} parent=39 // pred_check_branch
          %248 = sbr.rel (%p246) target = $region52
        $region51: #{tpu_custom_call.1} parent=39 // pred_region
          %249 = dma.done [#allocation6], 1024
        $region52: #{tpu_custom_call.1} parent=39 // pred_fallthru
          _
        %s250 = sand.u32 %s31, 1
        %s251 = scalar_lea.sflag [#allocation3], %s250
        %s252 = sand.u32 %s31, 1
        %s253 = smul.addr %s252, 256
        %s254 = scalar_lea.vmem [#allocation2], %s253
        %p255 = pneg %p44
        %p256 = pneg %p41
        %p257 = pneg %p65
        %p258 = pneg %p62
        %p259 = pneg %p86
        %p260 = pneg %p83
        %p261 = pneg %p107
        %p262 = pneg %p104
        %p263 = pneg %p128
        %p264 = pneg %p125
        %p265 = pneg %p154
        %p266 = pneg %p151
        %s267 = sand.u32 %s141, 1
        %s268 = scalar_lea.sflag [#allocation4], %s267
        %s269 = sand.u32 %s141, 1
        %s270 = smul.addr %s269, 256
        %s271 = scalar_lea.vmem [#allocation8], %s270
        %s272 = smul.u32 64, %s23
        %s273 = smul.u32 64, %s23
        %v275 = vld [vmem:[%s237] sm:$0xf]
        %v276 = vld [vmem:[%s237 + $0x4] sm:$0xf]
        %v277 = vld [vmem:[%s237 + $0x8] sm:$0xf]
        %v278 = vld [vmem:[%s237 + $0xc] sm:$0xf]
        %v279 = vld [vmem:[%s237 + $0x10] sm:$0xf]
        %v280 = vld [vmem:[%s237 + $0x14] sm:$0xf]
        %v281 = vld [vmem:[%s237 + $0x18] sm:$0xf]
        %v282 = vld [vmem:[%s237 + $0x1c] sm:$0xf]
        %v283 = vld [vmem:[%s237 + $0x20] sm:$0xf]
        %v284 = vld [vmem:[%s237 + $0x24] sm:$0xf]
        %v285 = vld [vmem:[%s237 + $0x28] sm:$0xf]
        %v286 = vld [vmem:[%s237 + $0x2c] sm:$0xf]
        %v287 = vld [vmem:[%s237 + $0x30] sm:$0xf]
        %v288 = vld [vmem:[%s237 + $0x34] sm:$0xf]
        %v289 = vld [vmem:[%s237 + $0x38] sm:$0xf]
        %v290 = vld [vmem:[%s237 + $0x3c] sm:$0xf]
        %v291 = vld [vmem:[%s237 + $0x40] sm:$0xf]
        %v292 = vld [vmem:[%s237 + $0x44] sm:$0xf]
        %v293 = vld [vmem:[%s237 + $0x48] sm:$0xf]
        %v294 = vld [vmem:[%s237 + $0x4c] sm:$0xf]
        %v295 = vld [vmem:[%s237 + $0x50] sm:$0xf]
        %v296 = vld [vmem:[%s237 + $0x54] sm:$0xf]
        %v297 = vld [vmem:[%s237 + $0x58] sm:$0xf]
        %v298 = vld [vmem:[%s237 + $0x5c] sm:$0xf]
        %v299 = vld [vmem:[%s237 + $0x60] sm:$0xf]
        %v300 = vld [vmem:[%s237 + $0x64] sm:$0xf]
        %v301 = vld [vmem:[%s237 + $0x68] sm:$0xf]
        %v302 = vld [vmem:[%s237 + $0x6c] sm:$0xf]
        %v303 = vld [vmem:[%s237 + $0x70] sm:$0xf]
        %v304 = vld [vmem:[%s237 + $0x74] sm:$0xf]
        %v305 = vld [vmem:[%s237 + $0x78] sm:$0xf]
        %v306 = vld [vmem:[%s237 + $0x7c] sm:$0xf]
        %v307 = vld [vmem:[%s237 + $0x80] sm:$0xf]
        %v308 = vld [vmem:[%s237 + $0x84] sm:$0xf]
        %v309 = vld [vmem:[%s237 + $0x88] sm:$0xf]
        %v310 = vld [vmem:[%s237 + $0x8c] sm:$0xf]
        %v311 = vld [vmem:[%s237 + $0x90] sm:$0xf]
        %v312 = vld [vmem:[%s237 + $0x94] sm:$0xf]
        %v313 = vld [vmem:[%s237 + $0x98] sm:$0xf]
        %v314 = vld [vmem:[%s237 + $0x9c] sm:$0xf]
        %v315 = vld [vmem:[%s237 + $0xa0] sm:$0xf]
        %v316 = vld [vmem:[%s237 + $0xa4] sm:$0xf]
        %v317 = vld [vmem:[%s237 + $0xa8] sm:$0xf]
        %v318 = vld [vmem:[%s237 + $0xac] sm:$0xf]
        %v319 = vld [vmem:[%s237 + $0xb0] sm:$0xf]
        %v320 = vld [vmem:[%s237 + $0xb4] sm:$0xf]
        %v321 = vld [vmem:[%s237 + $0xb8] sm:$0xf]
        %v322 = vld [vmem:[%s237 + $0xbc] sm:$0xf]
        %v323 = vld [vmem:[%s237 + $0xc0] sm:$0xf]
        %v324 = vld [vmem:[%s237 + $0xc4] sm:$0xf]
        %v325 = vld [vmem:[%s237 + $0xc8] sm:$0xf]
        %v326 = vld [vmem:[%s237 + $0xcc] sm:$0xf]
        %v327 = vld [vmem:[%s237 + $0xd0] sm:$0xf]
        %v328 = vld [vmem:[%s237 + $0xd4] sm:$0xf]
        %v329 = vld [vmem:[%s237 + $0xd8] sm:$0xf]
        %v330 = vld [vmem:[%s237 + $0xdc] sm:$0xf]
        %v331 = vld [vmem:[%s237 + $0xe0] sm:$0xf]
        %v332 = vld [vmem:[%s237 + $0xe4] sm:$0xf]
        %v333 = vld [vmem:[%s237 + $0xe8] sm:$0xf]
        %v334 = vld [vmem:[%s237 + $0xec] sm:$0xf]
        %v335 = vld [vmem:[%s237 + $0xf0] sm:$0xf]
        %v336 = vld [vmem:[%s237 + $0xf4] sm:$0xf]
        %v337 = vld [vmem:[%s237 + $0xf8] sm:$0xf]
        %v338 = vld [vmem:[%s237 + $0xfc] sm:$0xf]
        %v339 = vunpack.c.l.bf16 %v275
        %v340 = vunpack.c.l.bf16 %v276
        %v341 = vunpack.c.l.bf16 %v277
        %v342 = vunpack.c.l.bf16 %v278
        %v343 = vunpack.c.l.bf16 %v279
        %v344 = vunpack.c.l.bf16 %v280
        %v345 = vunpack.c.l.bf16 %v281
        %v346 = vunpack.c.l.bf16 %v282
        %v347 = vunpack.c.l.bf16 %v283
        %v348 = vunpack.c.l.bf16 %v284
        %v349 = vunpack.c.l.bf16 %v285
        %v350 = vunpack.c.l.bf16 %v286
        %v351 = vunpack.c.l.bf16 %v287
        %v352 = vunpack.c.l.bf16 %v288
        %v353 = vunpack.c.l.bf16 %v289
        %v354 = vunpack.c.l.bf16 %v290
        %v355 = vunpack.c.l.bf16 %v291
        %v356 = vunpack.c.l.bf16 %v292
        %v357 = vunpack.c.l.bf16 %v293
        %v358 = vunpack.c.l.bf16 %v294
        %v359 = vunpack.c.l.bf16 %v295
        %v360 = vunpack.c.l.bf16 %v296
        %v361 = vunpack.c.l.bf16 %v297
        %v362 = vunpack.c.l.bf16 %v298
        %v363 = vunpack.c.l.bf16 %v299
        %v364 = vunpack.c.l.bf16 %v300
        %v365 = vunpack.c.l.bf16 %v301
        %v366 = vunpack.c.l.bf16 %v302
        %v367 = vunpack.c.l.bf16 %v303
        %v368 = vunpack.c.l.bf16 %v304
        %v369 = vunpack.c.l.bf16 %v305
        %v370 = vunpack.c.l.bf16 %v306
        %v371 = vunpack.c.l.bf16 %v307
        %v372 = vunpack.c.l.bf16 %v308
        %v373 = vunpack.c.l.bf16 %v309
        %v374 = vunpack.c.l.bf16 %v310
        %v375 = vunpack.c.l.bf16 %v311
        %v376 = vunpack.c.l.bf16 %v312
        %v377 = vunpack.c.l.bf16 %v313
        %v378 = vunpack.c.l.bf16 %v314
        %v379 = vunpack.c.l.bf16 %v315
        %v380 = vunpack.c.l.bf16 %v316
        %v381 = vunpack.c.l.bf16 %v317
        %v382 = vunpack.c.l.bf16 %v318
        %v383 = vunpack.c.l.bf16 %v319
        %v384 = vunpack.c.l.bf16 %v320
        %v385 = vunpack.c.l.bf16 %v321
        %v386 = vunpack.c.l.bf16 %v322
        %v387 = vunpack.c.l.bf16 %v323
        %v388 = vunpack.c.l.bf16 %v324
        %v389 = vunpack.c.l.bf16 %v325
        %v390 = vunpack.c.l.bf16 %v326
        %v391 = vunpack.c.l.bf16 %v327
        %v392 = vunpack.c.l.bf16 %v328
        %v393 = vunpack.c.l.bf16 %v329
        %v394 = vunpack.c.l.bf16 %v330
        %v395 = vunpack.c.l.bf16 %v331
        %v396 = vunpack.c.l.bf16 %v332
        %v397 = vunpack.c.l.bf16 %v333
        %v398 = vunpack.c.l.bf16 %v334
        %v399 = vunpack.c.l.bf16 %v335
        %v400 = vunpack.c.l.bf16 %v336
        %v401 = vunpack.c.l.bf16 %v337
        %v402 = vunpack.c.l.bf16 %v338
        %v403 = vld [vmem:[#allocation5] sm:$0xf]
        %v404 = vld [vmem:[#allocation5 + $0x4] sm:$0xf]
        %v405 = vld [vmem:[#allocation5 + $0x8] sm:$0xf]
        %v406 = vld [vmem:[#allocation5 + $0xc] sm:$0xf]
        %v407 = vld [vmem:[#allocation5 + $0x10] sm:$0xf]
        %v408 = vld [vmem:[#allocation5 + $0x14] sm:$0xf]
        %v409 = vld [vmem:[#allocation5 + $0x18] sm:$0xf]
        %v410 = vld [vmem:[#allocation5 + $0x1c] sm:$0xf]
        %v411 = vld [vmem:[#allocation5 + $0x20] sm:$0xf]
        %v412 = vld [vmem:[#allocation5 + $0x24] sm:$0xf]
        %v413 = vld [vmem:[#allocation5 + $0x28] sm:$0xf]
        %v414 = vld [vmem:[#allocation5 + $0x2c] sm:$0xf]
        %v415 = vld [vmem:[#allocation5 + $0x30] sm:$0xf]
        %v416 = vld [vmem:[#allocation5 + $0x34] sm:$0xf]
        %v417 = vld [vmem:[#allocation5 + $0x38] sm:$0xf]
        %v418 = vld [vmem:[#allocation5 + $0x3c] sm:$0xf]
        %v419 = vld [vmem:[%s2] sm:$0x1]
        %v421 = vlaneseq
        %v422 = vshrl.u32 %v421, 7
        %v423 = vsub.s32 0, %v422
        %v424 = vrot.slane %v419, %v423
        %v490 = vunpack.c.l.b16 %v275
        %v491 = vunpack.c.l.b16 %v276
        %v492 = vunpack.c.l.b16 %v277
        %v493 = vunpack.c.l.b16 %v278
        %v494 = vunpack.c.l.b16 %v279
        %v495 = vunpack.c.l.b16 %v280
        %v496 = vunpack.c.l.b16 %v281
        %v497 = vunpack.c.l.b16 %v282
        %v498 = vunpack.c.l.b16 %v283
        %v499 = vunpack.c.l.b16 %v284
        %v500 = vunpack.c.l.b16 %v285
        %v501 = vunpack.c.l.b16 %v286
        %v502 = vunpack.c.l.b16 %v287
        %v503 = vunpack.c.l.b16 %v288
        %v504 = vunpack.c.l.b16 %v289
        %v505 = vunpack.c.l.b16 %v290
        %v506 = vunpack.c.l.b16 %v291
        %v507 = vunpack.c.l.b16 %v292
        %v508 = vunpack.c.l.b16 %v293
        %v509 = vunpack.c.l.b16 %v294
        %v510 = vunpack.c.l.b16 %v295
        %v511 = vunpack.c.l.b16 %v296
        %v512 = vunpack.c.l.b16 %v297
        %v513 = vunpack.c.l.b16 %v298
        %v514 = vunpack.c.l.b16 %v299
        %v515 = vunpack.c.l.b16 %v300
        %v516 = vunpack.c.l.b16 %v301
        %v517 = vunpack.c.l.b16 %v302
        %v518 = vunpack.c.l.b16 %v303
        %v519 = vunpack.c.l.b16 %v304
        %v520 = vunpack.c.l.b16 %v305
        %v521 = vunpack.c.l.b16 %v306
        %v522 = vunpack.c.l.b16 %v307
        %v523 = vunpack.c.l.b16 %v308
        %v524 = vunpack.c.l.b16 %v309
        %v525 = vunpack.c.l.b16 %v310
        %v526 = vunpack.c.l.b16 %v311
        %v527 = vunpack.c.l.b16 %v312
        %v528 = vunpack.c.l.b16 %v313
        %v529 = vunpack.c.l.b16 %v314
        %v530 = vunpack.c.l.b16 %v315
        %v531 = vunpack.c.l.b16 %v316
        %v532 = vunpack.c.l.b16 %v317
        %v533 = vunpack.c.l.b16 %v318
        %v534 = vunpack.c.l.b16 %v319
        %v535 = vunpack.c.l.b16 %v320
        %v536 = vunpack.c.l.b16 %v321
        %v537 = vunpack.c.l.b16 %v322
        %v538 = vunpack.c.l.b16 %v323
        %v539 = vunpack.c.l.b16 %v324
        %v540 = vunpack.c.l.b16 %v325
        %v541 = vunpack.c.l.b16 %v326
        %v542 = vunpack.c.l.b16 %v327
        %v543 = vunpack.c.l.b16 %v328
        %v544 = vunpack.c.l.b16 %v329
        %v545 = vunpack.c.l.b16 %v330
        %v546 = vunpack.c.l.b16 %v331
        %v547 = vunpack.c.l.b16 %v332
        %v548 = vunpack.c.l.b16 %v333
        %v549 = vunpack.c.l.b16 %v334
        %v550 = vunpack.c.l.b16 %v335
        %v551 = vunpack.c.l.b16 %v336
        %v552 = vunpack.c.l.b16 %v337
        %v553 = vunpack.c.l.b16 %v338
        %v554 = vpack.c.b16 %v491, %v490
        %v555 = vpack.c.b16 %v493, %v492
        %v556 = vpack.c.b16 %v495, %v494
        %v557 = vpack.c.b16 %v497, %v496
        %v558 = vpack.c.b16 %v499, %v498
        %v559 = vpack.c.b16 %v501, %v500
        %v560 = vpack.c.b16 %v503, %v502
        %v561 = vpack.c.b16 %v505, %v504
        %v562 = vpack.c.b16 %v507, %v506
        %v563 = vpack.c.b16 %v509, %v508
        %v564 = vpack.c.b16 %v511, %v510
        %v565 = vpack.c.b16 %v513, %v512
        %v566 = vpack.c.b16 %v515, %v514
        %v567 = vpack.c.b16 %v517, %v516
        %v568 = vpack.c.b16 %v519, %v518
        %v569 = vpack.c.b16 %v521, %v520
        %v570 = vpack.c.b16 %v523, %v522
        %v571 = vpack.c.b16 %v525, %v524
        %v572 = vpack.c.b16 %v527, %v526
        %v573 = vpack.c.b16 %v529, %v528
        %v574 = vpack.c.b16 %v531, %v530
        %v575 = vpack.c.b16 %v533, %v532
        %v576 = vpack.c.b16 %v535, %v534
        %v577 = vpack.c.b16 %v537, %v536
        %v578 = vpack.c.b16 %v539, %v538
        %v579 = vpack.c.b16 %v541, %v540
        %v580 = vpack.c.b16 %v543, %v542
        %v581 = vpack.c.b16 %v545, %v544
        %v582 = vpack.c.b16 %v547, %v546
        %v583 = vpack.c.b16 %v549, %v548
        %v584 = vpack.c.b16 %v551, %v550
        %v585 = vpack.c.b16 %v553, %v552
        %v634 = vunpack.c.l.b16 %v403
        %v635 = vunpack.c.l.b16 %v404
        %v636 = vunpack.c.l.b16 %v405
        %v637 = vunpack.c.l.b16 %v406
        %v638 = vunpack.c.l.b16 %v407
        %v639 = vunpack.c.l.b16 %v408
        %v640 = vunpack.c.l.b16 %v409
        %v641 = vunpack.c.l.b16 %v410
        %v642 = vunpack.c.l.b16 %v411
        %v643 = vunpack.c.l.b16 %v412
        %v644 = vunpack.c.l.b16 %v413
        %v645 = vunpack.c.l.b16 %v414
        %v646 = vunpack.c.l.b16 %v415
        %v647 = vunpack.c.l.b16 %v416
        %v648 = vunpack.c.l.b16 %v417
        %v649 = vunpack.c.l.b16 %v418
        %v650 = vpack.c.b16 %v635, %v634
        %v651 = vpack.c.b16 %v637, %v636
        %v652 = vpack.c.b16 %v639, %v638
        %v653 = vpack.c.b16 %v641, %v640
        %v654 = vpack.c.b16 %v643, %v642
        %v655 = vpack.c.b16 %v645, %v644
        %v656 = vpack.c.b16 %v647, %v646
        %v657 = vpack.c.b16 %v649, %v648
        %666 = vmatprep.subr.bf16.mxu0 0
        %667 = vmatpush1.bf16.msra.mxu0 %v650
        %668 = vmatprep.subr.bf16.mxu0 0
        %669 = vmatpush1.bf16.msra.mxu0 %v651
        %670 = vmatprep.subr.bf16.mxu0 0
        %671 = vmatpush1.bf16.msra.mxu0 %v652
        %672 = vmatprep.subr.bf16.mxu0 0
        %673 = vmatpush1.bf16.msra.mxu0 %v653
        %674 = vmatprep.subr.bf16.mxu0 0
        %675 = vmatpush1.bf16.msra.mxu0 %v654
        %676 = vmatprep.subr.bf16.mxu0 0
        %677 = vmatpush1.bf16.msra.mxu0 %v655
        %678 = vmatprep.subr.bf16.mxu0 0
        %679 = vmatpush1.bf16.msra.mxu0 %v656
        %680 = vmatprep.subr.bf16.mxu0 0
        %681 = vmatpush1.bf16.msra.mxu0 %v657
        %682 = vmatprep.subr.bf16.mxu0 0
        %683 = vmatpush1.bf16.msra.mxu0 0
        %684 = vmatprep.subr.bf16.mxu0 0
        %685 = vmatpush1.bf16.msra.mxu0 0
        %686 = vmatprep.subr.bf16.mxu0 0
        %687 = vmatpush1.bf16.msra.mxu0 0
        %688 = vmatprep.subr.bf16.mxu0 0
        %689 = vmatpush1.bf16.msra.mxu0 0
        %690 = vmatprep.subr.bf16.mxu0 0
        %691 = vmatpush1.bf16.msra.mxu0 0
        %692 = vmatprep.subr.bf16.mxu0 0
        %693 = vmatpush1.bf16.msra.mxu0 0
        %694 = vmatprep.subr.bf16.mxu0 0
        %695 = vmatpush1.bf16.msra.mxu0 0
        %696 = vmatprep.subr.bf16.mxu0 0
        %697 = vmatpush1.bf16.msra.mxu0 0
        %698 = vmatprep.mubr.bf16.mxu0 0
        %699 = vmatmul.mubr.bf16.gmra.mrb[0].mxu0 %v554
        %v700 = vpop.f32.mrb[0].mxu0
        %v701 = vadd.f32 %v424, %v700
        %v702 = vpop.f32.mrb[0].mxu0
        %v703 = vpop.f32.mrb[0].mxu0
        %v704 = vadd.f32 %v424, %v703
        %v705 = vpop.f32.mrb[0].mxu0
        %706 = vmatprep.mubr.bf16.mxu0 0
        %707 = vmatmul.mubr.bf16.gmra.mrb[0].mxu0 %v555
        %v708 = vpop.f32.mrb[0].mxu0
        %v709 = vadd.f32 %v424, %v708
        %v710 = vpop.f32.mrb[0].mxu0
        %v711 = vpop.f32.mrb[0].mxu0
        %v712 = vadd.f32 %v424, %v711
        %v713 = vpop.f32.mrb[0].mxu0
        %714 = vmatprep.mubr.bf16.mxu0 0
        %715 = vmatmul.mubr.bf16.gmra.mrb[0].mxu0 %v556
        %v716 = vpop.f32.mrb[0].mxu0
        %v717 = vadd.f32 %v424, %v716
        %v718 = vpop.f32.mrb[0].mxu0
        %v719 = vpop.f32.mrb[0].mxu0
        %v720 = vadd.f32 %v424, %v719
        %v721 = vpop.f32.mrb[0].mxu0
        %722 = vmatprep.mubr.bf16.mxu0 0
        %723 = vmatmul.mubr.bf16.gmra.mrb[0].mxu0 %v557
        %v724 = vpop.f32.mrb[0].mxu0
        %v725 = vadd.f32 %v424, %v724
        %v726 = vpop.f32.mrb[0].mxu0
        %v727 = vpop.f32.mrb[0].mxu0
        %v728 = vadd.f32 %v424, %v727
        %v729 = vpop.f32.mrb[0].mxu0
        %730 = vmatprep.mubr.bf16.mxu0 0
        %731 = vmatmul.mubr.bf16.gmra.mrb[0].mxu0 %v558
        %v732 = vpop.f32.mrb[0].mxu0
        %v733 = vadd.f32 %v424, %v732
        %v734 = vpop.f32.mrb[0].mxu0
        %v735 = vpop.f32.mrb[0].mxu0
        %v736 = vadd.f32 %v424, %v735
        %v737 = vpop.f32.mrb[0].mxu0
        %738 = vmatprep.mubr.bf16.mxu0 0
        %739 = vmatmul.mubr.bf16.gmra.mrb[0].mxu0 %v559
        %v740 = vpop.f32.mrb[0].mxu0
        %v741 = vadd.f32 %v424, %v740
        %v742 = vpop.f32.mrb[0].mxu0
        %v743 = vpop.f32.mrb[0].mxu0
        %v744 = vadd.f32 %v424, %v743
        %v745 = vpop.f32.mrb[0].mxu0
        %746 = vmatprep.mubr.bf16.mxu0 0
        %747 = vmatmul.mubr.bf16.gmra.mrb[0].mxu0 %v560
        %v748 = vpop.f32.mrb[0].mxu0
        %v749 = vadd.f32 %v424, %v748
        %v750 = vpop.f32.mrb[0].mxu0
        %v751 = vpop.f32.mrb[0].mxu0
        %v752 = vadd.f32 %v424, %v751
        %v753 = vpop.f32.mrb[0].mxu0
        %754 = vmatprep.mubr.bf16.mxu0 0
        %755 = vmatmul.mubr.bf16.gmra.mrb[0].mxu0 %v561
        %v756 = vpop.f32.mrb[0].mxu0
        %v757 = vadd.f32 %v424, %v756
        %v758 = vpop.f32.mrb[0].mxu0
        %v759 = vpop.f32.mrb[0].mxu0
        %v760 = vadd.f32 %v424, %v759
        %v761 = vpop.f32.mrb[0].mxu0
        %762 = vmatprep.mubr.bf16.mxu0 0
        %763 = vmatmul.mubr.bf16.gmra.mrb[0].mxu0 %v562
        %v764 = vpop.f32.mrb[0].mxu0
        %v765 = vadd.f32 %v424, %v764
        %v766 = vpop.f32.mrb[0].mxu0
        %v767 = vpop.f32.mrb[0].mxu0
        %v768 = vadd.f32 %v424, %v767
        %v769 = vpop.f32.mrb[0].mxu0
        %770 = vmatprep.mubr.bf16.mxu0 0
        %771 = vmatmul.mubr.bf16.gmra.mrb[0].mxu0 %v563
        %v772 = vpop.f32.mrb[0].mxu0
        %v773 = vadd.f32 %v424, %v772
        %v774 = vpop.f32.mrb[0].mxu0
        %v775 = vpop.f32.mrb[0].mxu0
        %v776 = vadd.f32 %v424, %v775
        %v777 = vpop.f32.mrb[0].mxu0
        %778 = vmatprep.mubr.bf16.mxu0 0
        %779 = vmatmul.mubr.bf16.gmra.mrb[0].mxu0 %v564
        %v780 = vpop.f32.mrb[0].mxu0
        %v781 = vadd.f32 %v424, %v780
        %v782 = vpop.f32.mrb[0].mxu0
        %v783 = vpop.f32.mrb[0].mxu0
        %v784 = vadd.f32 %v424, %v783
        %v785 = vpop.f32.mrb[0].mxu0
        %786 = vmatprep.mubr.bf16.mxu0 0
        %787 = vmatmul.mubr.bf16.gmra.mrb[0].mxu0 %v565
        %v788 = vpop.f32.mrb[0].mxu0
        %v789 = vadd.f32 %v424, %v788
        %v790 = vpop.f32.mrb[0].mxu0
        %v791 = vpop.f32.mrb[0].mxu0
        %v792 = vadd.f32 %v424, %v791
        %v793 = vpop.f32.mrb[0].mxu0
        %794 = vmatprep.mubr.bf16.mxu0 0
        %795 = vmatmul.mubr.bf16.gmra.mrb[0].mxu0 %v566
        %v796 = vpop.f32.mrb[0].mxu0
        %v797 = vadd.f32 %v424, %v796
        %v798 = vpop.f32.mrb[0].mxu0
        %v799 = vpop.f32.mrb[0].mxu0
        %v800 = vadd.f32 %v424, %v799
        %v801 = vpop.f32.mrb[0].mxu0
        %802 = vmatprep.mubr.bf16.mxu0 0
        %803 = vmatmul.mubr.bf16.gmra.mrb[0].mxu0 %v567
        %v804 = vpop.f32.mrb[0].mxu0
        %v805 = vadd.f32 %v424, %v804
        %v806 = vpop.f32.mrb[0].mxu0
        %v807 = vpop.f32.mrb[0].mxu0
        %v808 = vadd.f32 %v424, %v807
        %v809 = vpop.f32.mrb[0].mxu0
        %810 = vmatprep.mubr.bf16.mxu0 0
        %811 = vmatmul.mubr.bf16.gmra.mrb[0].mxu0 %v568
        %v812 = vpop.f32.mrb[0].mxu0
        %v813 = vadd.f32 %v424, %v812
        %v814 = vpop.f32.mrb[0].mxu0
        %v815 = vpop.f32.mrb[0].mxu0
        %v816 = vadd.f32 %v424, %v815
        %v817 = vpop.f32.mrb[0].mxu0
        %818 = vmatprep.mubr.bf16.mxu0 0
        %819 = vmatmul.mubr.bf16.gmra.mrb[0].mxu0 %v569
        %v820 = vpop.f32.mrb[0].mxu0
        %v821 = vadd.f32 %v424, %v820
        %v822 = vpop.f32.mrb[0].mxu0
        %v823 = vpop.f32.mrb[0].mxu0
        %v824 = vadd.f32 %v424, %v823
        %v825 = vpop.f32.mrb[0].mxu0
        %826 = vmatprep.mubr.bf16.mxu0 0
        %827 = vmatmul.mubr.bf16.gmra.mrb[0].mxu0 %v570
        %v828 = vpop.f32.mrb[0].mxu0
        %v829 = vadd.f32 %v424, %v828
        %v830 = vpop.f32.mrb[0].mxu0
        %v831 = vpop.f32.mrb[0].mxu0
        %v832 = vadd.f32 %v424, %v831
        %v833 = vpop.f32.mrb[0].mxu0
        %834 = vmatprep.mubr.bf16.mxu0 0
        %835 = vmatmul.mubr.bf16.gmra.mrb[0].mxu0 %v571
        %v836 = vpop.f32.mrb[0].mxu0
        %v837 = vadd.f32 %v424, %v836
        %v838 = vpop.f32.mrb[0].mxu0
        %v839 = vpop.f32.mrb[0].mxu0
        %v840 = vadd.f32 %v424, %v839
        %v841 = vpop.f32.mrb[0].mxu0
        %842 = vmatprep.mubr.bf16.mxu0 0
        %843 = vmatmul.mubr.bf16.gmra.mrb[0].mxu0 %v572
        %v844 = vpop.f32.mrb[0].mxu0
        %v845 = vadd.f32 %v424, %v844
        %v846 = vpop.f32.mrb[0].mxu0
        %v847 = vpop.f32.mrb[0].mxu0
        %v848 = vadd.f32 %v424, %v847
        %v849 = vpop.f32.mrb[0].mxu0
        %850 = vmatprep.mubr.bf16.mxu0 0
        %851 = vmatmul.mubr.bf16.gmra.mrb[0].mxu0 %v573
        %v852 = vpop.f32.mrb[0].mxu0
        %v853 = vadd.f32 %v424, %v852
        %v854 = vpop.f32.mrb[0].mxu0
        %v855 = vpop.f32.mrb[0].mxu0
        %v856 = vadd.f32 %v424, %v855
        %v857 = vpop.f32.mrb[0].mxu0
        %858 = vmatprep.mubr.bf16.mxu0 0
        %859 = vmatmul.mubr.bf16.gmra.mrb[0].mxu0 %v574
        %v860 = vpop.f32.mrb[0].mxu0
        %v861 = vadd.f32 %v424, %v860
        %v862 = vpop.f32.mrb[0].mxu0
        %v863 = vpop.f32.mrb[0].mxu0
        %v864 = vadd.f32 %v424, %v863
        %v865 = vpop.f32.mrb[0].mxu0
        %866 = vmatprep.mubr.bf16.mxu0 0
        %867 = vmatmul.mubr.bf16.gmra.mrb[0].mxu0 %v575
        %v868 = vpop.f32.mrb[0].mxu0
        %v869 = vadd.f32 %v424, %v868
        %v870 = vpop.f32.mrb[0].mxu0
        %v871 = vpop.f32.mrb[0].mxu0
        %v872 = vadd.f32 %v424, %v871
        %v873 = vpop.f32.mrb[0].mxu0
        %874 = vmatprep.mubr.bf16.mxu0 0
        %875 = vmatmul.mubr.bf16.gmra.mrb[0].mxu0 %v576
        %v876 = vpop.f32.mrb[0].mxu0
        %v877 = vadd.f32 %v424, %v876
        %v878 = vpop.f32.mrb[0].mxu0
        %v879 = vpop.f32.mrb[0].mxu0
        %v880 = vadd.f32 %v424, %v879
        %v881 = vpop.f32.mrb[0].mxu0
        %882 = vmatprep.mubr.bf16.mxu0 0
        %883 = vmatmul.mubr.bf16.gmra.mrb[0].mxu0 %v577
        %v884 = vpop.f32.mrb[0].mxu0
        %v885 = vadd.f32 %v424, %v884
        %v886 = vpop.f32.mrb[0].mxu0
        %v887 = vpop.f32.mrb[0].mxu0
        %v888 = vadd.f32 %v424, %v887
        %v889 = vpop.f32.mrb[0].mxu0
        %890 = vmatprep.mubr.bf16.mxu0 0
        %891 = vmatmul.mubr.bf16.gmra.mrb[0].mxu0 %v578
        %v892 = vpop.f32.mrb[0].mxu0
        %v893 = vadd.f32 %v424, %v892
        %v894 = vpop.f32.mrb[0].mxu0
        %v895 = vpop.f32.mrb[0].mxu0
        %v896 = vadd.f32 %v424, %v895
        %v897 = vpop.f32.mrb[0].mxu0
        %898 = vmatprep.mubr.bf16.mxu0 0
        %899 = vmatmul.mubr.bf16.gmra.mrb[0].mxu0 %v579
        %v900 = vpop.f32.mrb[0].mxu0
        %v901 = vadd.f32 %v424, %v900
        %v902 = vpop.f32.mrb[0].mxu0
        %v903 = vpop.f32.mrb[0].mxu0
        %v904 = vadd.f32 %v424, %v903
        %v905 = vpop.f32.mrb[0].mxu0
        %906 = vmatprep.mubr.bf16.mxu0 0
        %907 = vmatmul.mubr.bf16.gmra.mrb[0].mxu0 %v580
        %v908 = vpop.f32.mrb[0].mxu0
        %v909 = vadd.f32 %v424, %v908
        %v910 = vpop.f32.mrb[0].mxu0
        %v911 = vpop.f32.mrb[0].mxu0
        %v912 = vadd.f32 %v424, %v911
        %v913 = vpop.f32.mrb[0].mxu0
        %914 = vmatprep.mubr.bf16.mxu0 0
        %915 = vmatmul.mubr.bf16.gmra.mrb[0].mxu0 %v581
        %v916 = vpop.f32.mrb[0].mxu0
        %v917 = vadd.f32 %v424, %v916
        %v918 = vpop.f32.mrb[0].mxu0
        %v919 = vpop.f32.mrb[0].mxu0
        %v920 = vadd.f32 %v424, %v919
        %v921 = vpop.f32.mrb[0].mxu0
        %922 = vmatprep.mubr.bf16.mxu0 0
        %923 = vmatmul.mubr.bf16.gmra.mrb[0].mxu0 %v582
        %v924 = vpop.f32.mrb[0].mxu0
        %v925 = vadd.f32 %v424, %v924
        %v926 = vpop.f32.mrb[0].mxu0
        %v927 = vpop.f32.mrb[0].mxu0
        %v928 = vadd.f32 %v424, %v927
        %v929 = vpop.f32.mrb[0].mxu0
        %930 = vmatprep.mubr.bf16.mxu0 0
        %931 = vmatmul.mubr.bf16.gmra.mrb[0].mxu0 %v583
        %v932 = vpop.f32.mrb[0].mxu0
        %v933 = vadd.f32 %v424, %v932
        %v934 = vpop.f32.mrb[0].mxu0
        %v935 = vpop.f32.mrb[0].mxu0
        %v936 = vadd.f32 %v424, %v935
        %v937 = vpop.f32.mrb[0].mxu0
        %938 = vmatprep.mubr.bf16.mxu0 0
        %939 = vmatmul.mubr.bf16.gmra.mrb[0].mxu0 %v584
        %v940 = vpop.f32.mrb[0].mxu0
        %v941 = vadd.f32 %v424, %v940
        %v942 = vpop.f32.mrb[0].mxu0
        %v943 = vpop.f32.mrb[0].mxu0
        %v944 = vadd.f32 %v424, %v943
        %v945 = vpop.f32.mrb[0].mxu0
        %946 = vmatprep.mubr.bf16.mxu0 0
        %947 = vmatmul.mubr.bf16.gmra.mrb[0].mxu0 %v585
        %v948 = vpop.f32.mrb[0].mxu0
        %v949 = vadd.f32 %v424, %v948
        %v950 = vpop.f32.mrb[0].mxu0
        %v951 = vpop.f32.mrb[0].mxu0
        %v952 = vadd.f32 %v424, %v951
        %v953 = vpop.f32.mrb[0].mxu0
        %954 = vdwg.mxu0
        %v955 = vmax.f32 %v701, 0.0
        %v956 = vmax.f32 %v704, 0.0
        %v957 = vmax.f32 %v709, 0.0
        %v958 = vmax.f32 %v712, 0.0
        %v959 = vmax.f32 %v717, 0.0
        %v960 = vmax.f32 %v720, 0.0
        %v961 = vmax.f32 %v725, 0.0
        %v962 = vmax.f32 %v728, 0.0
        %v963 = vmax.f32 %v733, 0.0
        %v964 = vmax.f32 %v736, 0.0
        %v965 = vmax.f32 %v741, 0.0
        %v966 = vmax.f32 %v744, 0.0
        %v967 = vmax.f32 %v749, 0.0
        %v968 = vmax.f32 %v752, 0.0
        %v969 = vmax.f32 %v757, 0.0
        %v970 = vmax.f32 %v760, 0.0
        %v971 = vmax.f32 %v765, 0.0
        %v972 = vmax.f32 %v768, 0.0
        %v973 = vmax.f32 %v773, 0.0
        %v974 = vmax.f32 %v776, 0.0
        %v975 = vmax.f32 %v781, 0.0
        %v976 = vmax.f32 %v784, 0.0
        %v977 = vmax.f32 %v789, 0.0
        %v978 = vmax.f32 %v792, 0.0
        %v979 = vmax.f32 %v797, 0.0
        %v980 = vmax.f32 %v800, 0.0
        %v981 = vmax.f32 %v805, 0.0
        %v982 = vmax.f32 %v808, 0.0
        %v983 = vmax.f32 %v813, 0.0
        %v984 = vmax.f32 %v816, 0.0
        %v985 = vmax.f32 %v821, 0.0
        %v986 = vmax.f32 %v824, 0.0
        %v987 = vmax.f32 %v829, 0.0
        %v988 = vmax.f32 %v832, 0.0
        %v989 = vmax.f32 %v837, 0.0
        %v990 = vmax.f32 %v840, 0.0
        %v991 = vmax.f32 %v845, 0.0
        %v992 = vmax.f32 %v848, 0.0
        %v993 = vmax.f32 %v853, 0.0
        %v994 = vmax.f32 %v856, 0.0
        %v995 = vmax.f32 %v861, 0.0
        %v996 = vmax.f32 %v864, 0.0
        %v997 = vmax.f32 %v869, 0.0
        %v998 = vmax.f32 %v872, 0.0
        %v999 = vmax.f32 %v877, 0.0
        %v1000 = vmax.f32 %v880, 0.0
        %v1001 = vmax.f32 %v885, 0.0
        %v1002 = vmax.f32 %v888, 0.0
        %v1003 = vmax.f32 %v893, 0.0
        %v1004 = vmax.f32 %v896, 0.0
        %v1005 = vmax.f32 %v901, 0.0
        %v1006 = vmax.f32 %v904, 0.0
        %v1007 = vmax.f32 %v909, 0.0
        %v1008 = vmax.f32 %v912, 0.0
        %v1009 = vmax.f32 %v917, 0.0
        %v1010 = vmax.f32 %v920, 0.0
        %v1011 = vmax.f32 %v925, 0.0
        %v1012 = vmax.f32 %v928, 0.0
        %v1013 = vmax.f32 %v933, 0.0
        %v1014 = vmax.f32 %v936, 0.0
        %v1015 = vmax.f32 %v941, 0.0
        %v1016 = vmax.f32 %v944, 0.0
        %v1017 = vmax.f32 %v949, 0.0
        %v1018 = vmax.f32 %v952, 0.0
        %v1019 = vpack.c.bf16 %v956, %v955
        %v1020 = vpack.c.bf16 %v958, %v957
        %v1021 = vpack.c.bf16 %v960, %v959
        %v1022 = vpack.c.bf16 %v962, %v961
        %v1023 = vpack.c.bf16 %v964, %v963
        %v1024 = vpack.c.bf16 %v966, %v965
        %v1025 = vpack.c.bf16 %v968, %v967
        %v1026 = vpack.c.bf16 %v970, %v969
        %v1027 = vpack.c.bf16 %v972, %v971
        %v1028 = vpack.c.bf16 %v974, %v973
        %v1029 = vpack.c.bf16 %v976, %v975
        %v1030 = vpack.c.bf16 %v978, %v977
        %v1031 = vpack.c.bf16 %v980, %v979
        %v1032 = vpack.c.bf16 %v982, %v981
        %v1033 = vpack.c.bf16 %v984, %v983
        %v1034 = vpack.c.bf16 %v986, %v985
        %v1035 = vpack.c.bf16 %v988, %v987
        %v1036 = vpack.c.bf16 %v990, %v989
        %v1037 = vpack.c.bf16 %v992, %v991
        %v1038 = vpack.c.bf16 %v994, %v993
        %v1039 = vpack.c.bf16 %v996, %v995
        %v1040 = vpack.c.bf16 %v998, %v997
        %v1041 = vpack.c.bf16 %v1000, %v999
        %v1042 = vpack.c.bf16 %v1002, %v1001
        %v1043 = vpack.c.bf16 %v1004, %v1003
        %v1044 = vpack.c.bf16 %v1006, %v1005
        %v1045 = vpack.c.bf16 %v1008, %v1007
        %v1046 = vpack.c.bf16 %v1010, %v1009
        %v1047 = vpack.c.bf16 %v1012, %v1011
        %v1048 = vpack.c.bf16 %v1014, %v1013
        %v1049 = vpack.c.bf16 %v1016, %v1015
        %v1050 = vpack.c.bf16 %v1018, %v1017
        %v1051 = vld [vmem:[#allocation7] sm:$0xf]
        %v1052 = vld [vmem:[#allocation7 + $0x4] sm:$0xf]
        %v1053 = vld [vmem:[#allocation7 + $0x8] sm:$0xf]
        %v1054 = vld [vmem:[#allocation7 + $0xc] sm:$0xf]
        %v1055 = vld [vmem:[#allocation7 + $0x10] sm:$0xf]
        %v1056 = vld [vmem:[#allocation7 + $0x14] sm:$0xf]
        %v1057 = vld [vmem:[#allocation7 + $0x18] sm:$0xf]
        %v1058 = vld [vmem:[#allocation7 + $0x1c] sm:$0xf]
        %v1059 = vld [vmem:[#allocation7 + $0x20] sm:$0xf]
        %v1060 = vld [vmem:[#allocation7 + $0x24] sm:$0xf]
        %v1061 = vld [vmem:[#allocation7 + $0x28] sm:$0xf]
        %v1062 = vld [vmem:[#allocation7 + $0x2c] sm:$0xf]
        %v1063 = vld [vmem:[#allocation7 + $0x30] sm:$0xf]
        %v1064 = vld [vmem:[#allocation7 + $0x34] sm:$0xf]
        %v1065 = vld [vmem:[#allocation7 + $0x38] sm:$0xf]
        %v1066 = vld [vmem:[#allocation7 + $0x3c] sm:$0xf]
        %v1067 = vld [vmem:[%s4] sm:$0x1]
        %v1069 = vlaneseq
        %v1070 = vshrl.u32 %v1069, 7
        %v1071 = vsub.s32 0, %v1070
        %v1072 = vrot.slane %v1067, %v1071
        %v1090 = vunpack.c.l.b16 %v1051
        %v1091 = vunpack.c.l.b16 %v1052
        %v1092 = vunpack.c.l.b16 %v1053
        %v1093 = vunpack.c.l.b16 %v1054
        %v1094 = vunpack.c.l.b16 %v1055
        %v1095 = vunpack.c.l.b16 %v1056
        %v1096 = vunpack.c.l.b16 %v1057
        %v1097 = vunpack.c.l.b16 %v1058
        %v1098 = vunpack.c.l.b16 %v1059
        %v1099 = vunpack.c.l.b16 %v1060
        %v1100 = vunpack.c.l.b16 %v1061
        %v1101 = vunpack.c.l.b16 %v1062
        %v1102 = vunpack.c.l.b16 %v1063
        %v1103 = vunpack.c.l.b16 %v1064
        %v1104 = vunpack.c.l.b16 %v1065
        %v1105 = vunpack.c.l.b16 %v1066
        %v1106 = vpack.c.b16 %v1091, %v1090
        %v1107 = vpack.c.b16 %v1093, %v1092
        %v1108 = vpack.c.b16 %v1095, %v1094
        %v1109 = vpack.c.b16 %v1097, %v1096
        %v1110 = vpack.c.b16 %v1099, %v1098
        %v1111 = vpack.c.b16 %v1101, %v1100
        %v1112 = vpack.c.b16 %v1103, %v1102
        %v1113 = vpack.c.b16 %v1105, %v1104
        %1122 = vmatprep.subr.bf16.mxu0 0
        %1123 = vmatpush1.bf16.msra.mxu0 %v1106
        %1124 = vmatprep.subr.bf16.mxu0 0
        %1125 = vmatpush1.bf16.msra.mxu0 %v1107
        %1126 = vmatprep.subr.bf16.mxu0 0
        %1127 = vmatpush1.bf16.msra.mxu0 %v1108
        %1128 = vmatprep.subr.bf16.mxu0 0
        %1129 = vmatpush1.bf16.msra.mxu0 %v1109
        %1130 = vmatprep.subr.bf16.mxu0 0
        %1131 = vmatpush1.bf16.msra.mxu0 %v1110
        %1132 = vmatprep.subr.bf16.mxu0 0
        %1133 = vmatpush1.bf16.msra.mxu0 %v1111
        %1134 = vmatprep.subr.bf16.mxu0 0
        %1135 = vmatpush1.bf16.msra.mxu0 %v1112
        %1136 = vmatprep.subr.bf16.mxu0 0
        %1137 = vmatpush1.bf16.msra.mxu0 %v1113
        %1138 = vmatprep.subr.bf16.mxu0 0
        %1139 = vmatpush1.bf16.msra.mxu0 0
        %1140 = vmatprep.subr.bf16.mxu0 0
        %1141 = vmatpush1.bf16.msra.mxu0 0
        %1142 = vmatprep.subr.bf16.mxu0 0
        %1143 = vmatpush1.bf16.msra.mxu0 0
        %1144 = vmatprep.subr.bf16.mxu0 0
        %1145 = vmatpush1.bf16.msra.mxu0 0
        %1146 = vmatprep.subr.bf16.mxu0 0
        %1147 = vmatpush1.bf16.msra.mxu0 0
        %1148 = vmatprep.subr.bf16.mxu0 0
        %1149 = vmatpush1.bf16.msra.mxu0 0
        %1150 = vmatprep.subr.bf16.mxu0 0
        %1151 = vmatpush1.bf16.msra.mxu0 0
        %1152 = vmatprep.subr.bf16.mxu0 0
        %1153 = vmatpush1.bf16.msra.mxu0 0
        %1154 = vmatprep.mubr.bf16.mxu0 0
        %1155 = vmatmul.mubr.bf16.gmra.mrb[0].mxu0 %v1019
        %v1156 = vpop.f32.mrb[0].mxu0
        %v1157 = vadd.f32 %v1072, %v1156
        %v1158 = vpop.f32.mrb[0].mxu0
        %v1159 = vpop.f32.mrb[0].mxu0
        %v1160 = vadd.f32 %v1072, %v1159
        %v1161 = vpop.f32.mrb[0].mxu0
        %1162 = vmatprep.mubr.bf16.mxu0 0
        %1163 = vmatmul.mubr.bf16.gmra.mrb[0].mxu0 %v1020
        %v1164 = vpop.f32.mrb[0].mxu0
        %v1165 = vadd.f32 %v1072, %v1164
        %v1166 = vpop.f32.mrb[0].mxu0
        %v1167 = vpop.f32.mrb[0].mxu0
        %v1168 = vadd.f32 %v1072, %v1167
        %v1169 = vpop.f32.mrb[0].mxu0
        %1170 = vmatprep.mubr.bf16.mxu0 0
        %1171 = vmatmul.mubr.bf16.gmra.mrb[0].mxu0 %v1021
        %v1172 = vpop.f32.mrb[0].mxu0
        %v1173 = vadd.f32 %v1072, %v1172
        %v1174 = vpop.f32.mrb[0].mxu0
        %v1175 = vpop.f32.mrb[0].mxu0
        %v1176 = vadd.f32 %v1072, %v1175
        %v1177 = vpop.f32.mrb[0].mxu0
        %1178 = vmatprep.mubr.bf16.mxu0 0
        %1179 = vmatmul.mubr.bf16.gmra.mrb[0].mxu0 %v1022
        %v1180 = vpop.f32.mrb[0].mxu0
        %v1181 = vadd.f32 %v1072, %v1180
        %v1182 = vpop.f32.mrb[0].mxu0
        %v1183 = vpop.f32.mrb[0].mxu0
        %v1184 = vadd.f32 %v1072, %v1183
        %v1185 = vpop.f32.mrb[0].mxu0
        %1186 = vmatprep.mubr.bf16.mxu0 0
        %1187 = vmatmul.mubr.bf16.gmra.mrb[0].mxu0 %v1023
        %v1188 = vpop.f32.mrb[0].mxu0
        %v1189 = vadd.f32 %v1072, %v1188
        %v1190 = vpop.f32.mrb[0].mxu0
        %v1191 = vpop.f32.mrb[0].mxu0
        %v1192 = vadd.f32 %v1072, %v1191
        %v1193 = vpop.f32.mrb[0].mxu0
        %1194 = vmatprep.mubr.bf16.mxu0 0
        %1195 = vmatmul.mubr.bf16.gmra.mrb[0].mxu0 %v1024
        %v1196 = vpop.f32.mrb[0].mxu0
        %v1197 = vadd.f32 %v1072, %v1196
        %v1198 = vpop.f32.mrb[0].mxu0
        %v1199 = vpop.f32.mrb[0].mxu0
        %v1200 = vadd.f32 %v1072, %v1199
        %v1201 = vpop.f32.mrb[0].mxu0
        %1202 = vmatprep.mubr.bf16.mxu0 0
        %1203 = vmatmul.mubr.bf16.gmra.mrb[0].mxu0 %v1025
        %v1204 = vpop.f32.mrb[0].mxu0
        %v1205 = vadd.f32 %v1072, %v1204
        %v1206 = vpop.f32.mrb[0].mxu0
        %v1207 = vpop.f32.mrb[0].mxu0
        %v1208 = vadd.f32 %v1072, %v1207
        %v1209 = vpop.f32.mrb[0].mxu0
        %1210 = vmatprep.mubr.bf16.mxu0 0
        %1211 = vmatmul.mubr.bf16.gmra.mrb[0].mxu0 %v1026
        %v1212 = vpop.f32.mrb[0].mxu0
        %v1213 = vadd.f32 %v1072, %v1212
        %v1214 = vpop.f32.mrb[0].mxu0
        %v1215 = vpop.f32.mrb[0].mxu0
        %v1216 = vadd.f32 %v1072, %v1215
        %v1217 = vpop.f32.mrb[0].mxu0
        %1218 = vmatprep.mubr.bf16.mxu0 0
        %1219 = vmatmul.mubr.bf16.gmra.mrb[0].mxu0 %v1027
        %v1220 = vpop.f32.mrb[0].mxu0
        %v1221 = vadd.f32 %v1072, %v1220
        %v1222 = vpop.f32.mrb[0].mxu0
        %v1223 = vpop.f32.mrb[0].mxu0
        %v1224 = vadd.f32 %v1072, %v1223
        %v1225 = vpop.f32.mrb[0].mxu0
        %1226 = vmatprep.mubr.bf16.mxu0 0
        %1227 = vmatmul.mubr.bf16.gmra.mrb[0].mxu0 %v1028
        %v1228 = vpop.f32.mrb[0].mxu0
        %v1229 = vadd.f32 %v1072, %v1228
        %v1230 = vpop.f32.mrb[0].mxu0
        %v1231 = vpop.f32.mrb[0].mxu0
        %v1232 = vadd.f32 %v1072, %v1231
        %v1233 = vpop.f32.mrb[0].mxu0
        %1234 = vmatprep.mubr.bf16.mxu0 0
        %1235 = vmatmul.mubr.bf16.gmra.mrb[0].mxu0 %v1029
        %v1236 = vpop.f32.mrb[0].mxu0
        %v1237 = vadd.f32 %v1072, %v1236
        %v1238 = vpop.f32.mrb[0].mxu0
        %v1239 = vpop.f32.mrb[0].mxu0
        %v1240 = vadd.f32 %v1072, %v1239
        %v1241 = vpop.f32.mrb[0].mxu0
        %1242 = vmatprep.mubr.bf16.mxu0 0
        %1243 = vmatmul.mubr.bf16.gmra.mrb[0].mxu0 %v1030
        %v1244 = vpop.f32.mrb[0].mxu0
        %v1245 = vadd.f32 %v1072, %v1244
        %v1246 = vpop.f32.mrb[0].mxu0
        %v1247 = vpop.f32.mrb[0].mxu0
        %v1248 = vadd.f32 %v1072, %v1247
        %v1249 = vpop.f32.mrb[0].mxu0
        %1250 = vmatprep.mubr.bf16.mxu0 0
        %1251 = vmatmul.mubr.bf16.gmra.mrb[0].mxu0 %v1031
        %v1252 = vpop.f32.mrb[0].mxu0
        %v1253 = vadd.f32 %v1072, %v1252
        %v1254 = vpop.f32.mrb[0].mxu0
        %v1255 = vpop.f32.mrb[0].mxu0
        %v1256 = vadd.f32 %v1072, %v1255
        %v1257 = vpop.f32.mrb[0].mxu0
        %1258 = vmatprep.mubr.bf16.mxu0 0
        %1259 = vmatmul.mubr.bf16.gmra.mrb[0].mxu0 %v1032
        %v1260 = vpop.f32.mrb[0].mxu0
        %v1261 = vadd.f32 %v1072, %v1260
        %v1262 = vpop.f32.mrb[0].mxu0
        %v1263 = vpop.f32.mrb[0].mxu0
        %v1264 = vadd.f32 %v1072, %v1263
        %v1265 = vpop.f32.mrb[0].mxu0
        %1266 = vmatprep.mubr.bf16.mxu0 0
        %1267 = vmatmul.mubr.bf16.gmra.mrb[0].mxu0 %v1033
        %v1268 = vpop.f32.mrb[0].mxu0
        %v1269 = vadd.f32 %v1072, %v1268
        %v1270 = vpop.f32.mrb[0].mxu0
        %v1271 = vpop.f32.mrb[0].mxu0
        %v1272 = vadd.f32 %v1072, %v1271
        %v1273 = vpop.f32.mrb[0].mxu0
        %1274 = vmatprep.mubr.bf16.mxu0 0
        %1275 = vmatmul.mubr.bf16.gmra.mrb[0].mxu0 %v1034
        %v1276 = vpop.f32.mrb[0].mxu0
        %v1277 = vadd.f32 %v1072, %v1276
        %v1278 = vpop.f32.mrb[0].mxu0
        %v1279 = vpop.f32.mrb[0].mxu0
        %v1280 = vadd.f32 %v1072, %v1279
        %v1281 = vpop.f32.mrb[0].mxu0
        %1282 = vmatprep.mubr.bf16.mxu0 0
        %1283 = vmatmul.mubr.bf16.gmra.mrb[0].mxu0 %v1035
        %v1284 = vpop.f32.mrb[0].mxu0
        %v1285 = vadd.f32 %v1072, %v1284
        %v1286 = vpop.f32.mrb[0].mxu0
        %v1287 = vpop.f32.mrb[0].mxu0
        %v1288 = vadd.f32 %v1072, %v1287
        %v1289 = vpop.f32.mrb[0].mxu0
        %1290 = vmatprep.mubr.bf16.mxu0 0
        %1291 = vmatmul.mubr.bf16.gmra.mrb[0].mxu0 %v1036
        %v1292 = vpop.f32.mrb[0].mxu0
        %v1293 = vadd.f32 %v1072, %v1292
        %v1294 = vpop.f32.mrb[0].mxu0
        %v1295 = vpop.f32.mrb[0].mxu0
        %v1296 = vadd.f32 %v1072, %v1295
        %v1297 = vpop.f32.mrb[0].mxu0
        %1298 = vmatprep.mubr.bf16.mxu0 0
        %1299 = vmatmul.mubr.bf16.gmra.mrb[0].mxu0 %v1037
        %v1300 = vpop.f32.mrb[0].mxu0
        %v1301 = vadd.f32 %v1072, %v1300
        %v1302 = vpop.f32.mrb[0].mxu0
        %v1303 = vpop.f32.mrb[0].mxu0
        %v1304 = vadd.f32 %v1072, %v1303
        %v1305 = vpop.f32.mrb[0].mxu0
        %1306 = vmatprep.mubr.bf16.mxu0 0
        %1307 = vmatmul.mubr.bf16.gmra.mrb[0].mxu0 %v1038
        %v1308 = vpop.f32.mrb[0].mxu0
        %v1309 = vadd.f32 %v1072, %v1308
        %v1310 = vpop.f32.mrb[0].mxu0
        %v1311 = vpop.f32.mrb[0].mxu0
        %v1312 = vadd.f32 %v1072, %v1311
        %v1313 = vpop.f32.mrb[0].mxu0
        %1314 = vmatprep.mubr.bf16.mxu0 0
        %1315 = vmatmul.mubr.bf16.gmra.mrb[0].mxu0 %v1039
        %v1316 = vpop.f32.mrb[0].mxu0
        %v1317 = vadd.f32 %v1072, %v1316
        %v1318 = vpop.f32.mrb[0].mxu0
        %v1319 = vpop.f32.mrb[0].mxu0
        %v1320 = vadd.f32 %v1072, %v1319
        %v1321 = vpop.f32.mrb[0].mxu0
        %1322 = vmatprep.mubr.bf16.mxu0 0
        %1323 = vmatmul.mubr.bf16.gmra.mrb[0].mxu0 %v1040
        %v1324 = vpop.f32.mrb[0].mxu0
        %v1325 = vadd.f32 %v1072, %v1324
        %v1326 = vpop.f32.mrb[0].mxu0
        %v1327 = vpop.f32.mrb[0].mxu0
        %v1328 = vadd.f32 %v1072, %v1327
        %v1329 = vpop.f32.mrb[0].mxu0
        %1330 = vmatprep.mubr.bf16.mxu0 0
        %1331 = vmatmul.mubr.bf16.gmra.mrb[0].mxu0 %v1041
        %v1332 = vpop.f32.mrb[0].mxu0
        %v1333 = vadd.f32 %v1072, %v1332
        %v1334 = vpop.f32.mrb[0].mxu0
        %v1335 = vpop.f32.mrb[0].mxu0
        %v1336 = vadd.f32 %v1072, %v1335
        %v1337 = vpop.f32.mrb[0].mxu0
        %1338 = vmatprep.mubr.bf16.mxu0 0
        %1339 = vmatmul.mubr.bf16.gmra.mrb[0].mxu0 %v1042
        %v1340 = vpop.f32.mrb[0].mxu0
        %v1341 = vadd.f32 %v1072, %v1340
        %v1342 = vpop.f32.mrb[0].mxu0
        %v1343 = vpop.f32.mrb[0].mxu0
        %v1344 = vadd.f32 %v1072, %v1343
        %v1345 = vpop.f32.mrb[0].mxu0
        %1346 = vmatprep.mubr.bf16.mxu0 0
        %1347 = vmatmul.mubr.bf16.gmra.mrb[0].mxu0 %v1043
        %v1348 = vpop.f32.mrb[0].mxu0
        %v1349 = vadd.f32 %v1072, %v1348
        %v1350 = vpop.f32.mrb[0].mxu0
        %v1351 = vpop.f32.mrb[0].mxu0
        %v1352 = vadd.f32 %v1072, %v1351
        %v1353 = vpop.f32.mrb[0].mxu0
        %1354 = vmatprep.mubr.bf16.mxu0 0
        %1355 = vmatmul.mubr.bf16.gmra.mrb[0].mxu0 %v1044
        %v1356 = vpop.f32.mrb[0].mxu0
        %v1357 = vadd.f32 %v1072, %v1356
        %v1358 = vpop.f32.mrb[0].mxu0
        %v1359 = vpop.f32.mrb[0].mxu0
        %v1360 = vadd.f32 %v1072, %v1359
        %v1361 = vpop.f32.mrb[0].mxu0
        %1362 = vmatprep.mubr.bf16.mxu0 0
        %1363 = vmatmul.mubr.bf16.gmra.mrb[0].mxu0 %v1045
        %v1364 = vpop.f32.mrb[0].mxu0
        %v1365 = vadd.f32 %v1072, %v1364
        %v1366 = vpop.f32.mrb[0].mxu0
        %v1367 = vpop.f32.mrb[0].mxu0
        %v1368 = vadd.f32 %v1072, %v1367
        %v1369 = vpop.f32.mrb[0].mxu0
        %1370 = vmatprep.mubr.bf16.mxu0 0
        %1371 = vmatmul.mubr.bf16.gmra.mrb[0].mxu0 %v1046
        %v1372 = vpop.f32.mrb[0].mxu0
        %v1373 = vadd.f32 %v1072, %v1372
        %v1374 = vpop.f32.mrb[0].mxu0
        %v1375 = vpop.f32.mrb[0].mxu0
        %v1376 = vadd.f32 %v1072, %v1375
        %v1377 = vpop.f32.mrb[0].mxu0
        %1378 = vmatprep.mubr.bf16.mxu0 0
        %1379 = vmatmul.mubr.bf16.gmra.mrb[0].mxu0 %v1047
        %v1380 = vpop.f32.mrb[0].mxu0
        %v1381 = vadd.f32 %v1072, %v1380
        %v1382 = vpop.f32.mrb[0].mxu0
        %v1383 = vpop.f32.mrb[0].mxu0
        %v1384 = vadd.f32 %v1072, %v1383
        %v1385 = vpop.f32.mrb[0].mxu0
        %1386 = vmatprep.mubr.bf16.mxu0 0
        %1387 = vmatmul.mubr.bf16.gmra.mrb[0].mxu0 %v1048
        %v1388 = vpop.f32.mrb[0].mxu0
        %v1389 = vadd.f32 %v1072, %v1388
        %v1390 = vpop.f32.mrb[0].mxu0
        %v1391 = vpop.f32.mrb[0].mxu0
        %v1392 = vadd.f32 %v1072, %v1391
        %v1393 = vpop.f32.mrb[0].mxu0
        %1394 = vmatprep.mubr.bf16.mxu0 0
        %1395 = vmatmul.mubr.bf16.gmra.mrb[0].mxu0 %v1049
        %v1396 = vpop.f32.mrb[0].mxu0
        %v1397 = vadd.f32 %v1072, %v1396
        %v1398 = vpop.f32.mrb[0].mxu0
        %v1399 = vpop.f32.mrb[0].mxu0
        %v1400 = vadd.f32 %v1072, %v1399
        %v1401 = vpop.f32.mrb[0].mxu0
        %1402 = vmatprep.mubr.bf16.mxu0 0
        %1403 = vmatmul.mubr.bf16.gmra.mrb[0].mxu0 %v1050
        %v1404 = vpop.f32.mrb[0].mxu0
        %v1405 = vadd.f32 %v1072, %v1404
        %v1406 = vpop.f32.mrb[0].mxu0
        %v1407 = vpop.f32.mrb[0].mxu0
        %v1408 = vadd.f32 %v1072, %v1407
        %v1409 = vpop.f32.mrb[0].mxu0
        %1410 = vdwg.mxu0
        %v1411 = vadd.f32 %v1157, %v339
        %v1412 = vadd.f32 %v1160, %v340
        %v1413 = vadd.f32 %v1165, %v341
        %v1414 = vadd.f32 %v1168, %v342
        %v1415 = vadd.f32 %v1173, %v343
        %v1416 = vadd.f32 %v1176, %v344
        %v1417 = vadd.f32 %v1181, %v345
        %v1418 = vadd.f32 %v1184, %v346
        %v1419 = vadd.f32 %v1189, %v347
        %v1420 = vadd.f32 %v1192, %v348
        %v1421 = vadd.f32 %v1197, %v349
        %v1422 = vadd.f32 %v1200, %v350
        %v1423 = vadd.f32 %v1205, %v351
        %v1424 = vadd.f32 %v1208, %v352
        %v1425 = vadd.f32 %v1213, %v353
        %v1426 = vadd.f32 %v1216, %v354
        %v1427 = vadd.f32 %v1221, %v355
        %v1428 = vadd.f32 %v1224, %v356
        %v1429 = vadd.f32 %v1229, %v357
        %v1430 = vadd.f32 %v1232, %v358
        %v1431 = vadd.f32 %v1237, %v359
        %v1432 = vadd.f32 %v1240, %v360
        %v1433 = vadd.f32 %v1245, %v361
        %v1434 = vadd.f32 %v1248, %v362
        %v1435 = vadd.f32 %v1253, %v363
        %v1436 = vadd.f32 %v1256, %v364
        %v1437 = vadd.f32 %v1261, %v365
        %v1438 = vadd.f32 %v1264, %v366
        %v1439 = vadd.f32 %v1269, %v367
        %v1440 = vadd.f32 %v1272, %v368
        %v1441 = vadd.f32 %v1277, %v369
        %v1442 = vadd.f32 %v1280, %v370
        %v1443 = vadd.f32 %v1285, %v371
        %v1444 = vadd.f32 %v1288, %v372
        %v1445 = vadd.f32 %v1293, %v373
        %v1446 = vadd.f32 %v1296, %v374
        %v1447 = vadd.f32 %v1301, %v375
        %v1448 = vadd.f32 %v1304, %v376
        %v1449 = vadd.f32 %v1309, %v377
        %v1450 = vadd.f32 %v1312, %v378
        %v1451 = vadd.f32 %v1317, %v379
        %v1452 = vadd.f32 %v1320, %v380
        %v1453 = vadd.f32 %v1325, %v381
        %v1454 = vadd.f32 %v1328, %v382
        %v1455 = vadd.f32 %v1333, %v383
        %v1456 = vadd.f32 %v1336, %v384
        %v1457 = vadd.f32 %v1341, %v385
        %v1458 = vadd.f32 %v1344, %v386
        %v1459 = vadd.f32 %v1349, %v387
        %v1460 = vadd.f32 %v1352, %v388
        %v1461 = vadd.f32 %v1357, %v389
        %v1462 = vadd.f32 %v1360, %v390
        %v1463 = vadd.f32 %v1365, %v391
        %v1464 = vadd.f32 %v1368, %v392
        %v1465 = vadd.f32 %v1373, %v393
        %v1466 = vadd.f32 %v1376, %v394
        %v1467 = vadd.f32 %v1381, %v395
        %v1468 = vadd.f32 %v1384, %v396
        %v1469 = vadd.f32 %v1389, %v397
        %v1470 = vadd.f32 %v1392, %v398
        %v1471 = vadd.f32 %v1397, %v399
        %v1472 = vadd.f32 %v1400, %v400
        %v1473 = vadd.f32 %v1405, %v401
        %v1474 = vadd.f32 %v1408, %v402
        %v1475 = vpack.c.bf16 %v1412, %v1411
        %v1476 = vpack.c.bf16 %v1414, %v1413
        %v1477 = vpack.c.bf16 %v1416, %v1415
        %v1478 = vpack.c.bf16 %v1418, %v1417
        %v1479 = vpack.c.bf16 %v1420, %v1419
        %v1480 = vpack.c.bf16 %v1422, %v1421
        %v1481 = vpack.c.bf16 %v1424, %v1423
        %v1482 = vpack.c.bf16 %v1426, %v1425
        %v1483 = vpack.c.bf16 %v1428, %v1427
        %v1484 = vpack.c.bf16 %v1430, %v1429
        %v1485 = vpack.c.bf16 %v1432, %v1431
        %v1486 = vpack.c.bf16 %v1434, %v1433
        %v1487 = vpack.c.bf16 %v1436, %v1435
        %v1488 = vpack.c.bf16 %v1438, %v1437
        %v1489 = vpack.c.bf16 %v1440, %v1439
        %v1490 = vpack.c.bf16 %v1442, %v1441
        %v1491 = vpack.c.bf16 %v1444, %v1443
        %v1492 = vpack.c.bf16 %v1446, %v1445
        %v1493 = vpack.c.bf16 %v1448, %v1447
        %v1494 = vpack.c.bf16 %v1450, %v1449
        %v1495 = vpack.c.bf16 %v1452, %v1451
        %v1496 = vpack.c.bf16 %v1454, %v1453
        %v1497 = vpack.c.bf16 %v1456, %v1455
        %v1498 = vpack.c.bf16 %v1458, %v1457
        %v1499 = vpack.c.bf16 %v1460, %v1459
        %v1500 = vpack.c.bf16 %v1462, %v1461
        %v1501 = vpack.c.bf16 %v1464, %v1463
        %v1502 = vpack.c.bf16 %v1466, %v1465
        %v1503 = vpack.c.bf16 %v1468, %v1467
        %v1504 = vpack.c.bf16 %v1470, %v1469
        %v1505 = vpack.c.bf16 %v1472, %v1471
        %v1506 = vpack.c.bf16 %v1474, %v1473
        %v1539 = vunpack.c.l.b16 %v1475
        %v1540 = vunpack.c.h.b16 %v1475
        %v1541 = vunpack.c.l.b16 %v1476
        %v1542 = vunpack.c.h.b16 %v1476
        %v1543 = vunpack.c.l.b16 %v1477
        %v1544 = vunpack.c.h.b16 %v1477
        %v1545 = vunpack.c.l.b16 %v1478
        %v1546 = vunpack.c.h.b16 %v1478
        %v1547 = vunpack.c.l.b16 %v1479
        %v1548 = vunpack.c.h.b16 %v1479
        %v1549 = vunpack.c.l.b16 %v1480
        %v1550 = vunpack.c.h.b16 %v1480
        %v1551 = vunpack.c.l.b16 %v1481
        %v1552 = vunpack.c.h.b16 %v1481
        %v1553 = vunpack.c.l.b16 %v1482
        %v1554 = vunpack.c.h.b16 %v1482
        %v1555 = vunpack.c.l.b16 %v1483
        %v1556 = vunpack.c.h.b16 %v1483
        %v1557 = vunpack.c.l.b16 %v1484
        %v1558 = vunpack.c.h.b16 %v1484
        %v1559 = vunpack.c.l.b16 %v1485
        %v1560 = vunpack.c.h.b16 %v1485
        %v1561 = vunpack.c.l.b16 %v1486
        %v1562 = vunpack.c.h.b16 %v1486
        %v1563 = vunpack.c.l.b16 %v1487
        %v1564 = vunpack.c.h.b16 %v1487
        %v1565 = vunpack.c.l.b16 %v1488
        %v1566 = vunpack.c.h.b16 %v1488
        %v1567 = vunpack.c.l.b16 %v1489
        %v1568 = vunpack.c.h.b16 %v1489
        %v1569 = vunpack.c.l.b16 %v1490
        %v1570 = vunpack.c.h.b16 %v1490
        %v1571 = vunpack.c.l.b16 %v1491
        %v1572 = vunpack.c.h.b16 %v1491
        %v1573 = vunpack.c.l.b16 %v1492
        %v1574 = vunpack.c.h.b16 %v1492
        %v1575 = vunpack.c.l.b16 %v1493
        %v1576 = vunpack.c.h.b16 %v1493
        %v1577 = vunpack.c.l.b16 %v1494
        %v1578 = vunpack.c.h.b16 %v1494
        %v1579 = vunpack.c.l.b16 %v1495
        %v1580 = vunpack.c.h.b16 %v1495
        %v1581 = vunpack.c.l.b16 %v1496
        %v1582 = vunpack.c.h.b16 %v1496
        %v1583 = vunpack.c.l.b16 %v1497
        %v1584 = vunpack.c.h.b16 %v1497
        %v1585 = vunpack.c.l.b16 %v1498
        %v1586 = vunpack.c.h.b16 %v1498
        %v1587 = vunpack.c.l.b16 %v1499
        %v1588 = vunpack.c.h.b16 %v1499
        %v1589 = vunpack.c.l.b16 %v1500
        %v1590 = vunpack.c.h.b16 %v1500
        %v1591 = vunpack.c.l.b16 %v1501
        %v1592 = vunpack.c.h.b16 %v1501
        %v1593 = vunpack.c.l.b16 %v1502
        %v1594 = vunpack.c.h.b16 %v1502
        %v1595 = vunpack.c.l.b16 %v1503
        %v1596 = vunpack.c.h.b16 %v1503
        %v1597 = vunpack.c.l.b16 %v1504
        %v1598 = vunpack.c.h.b16 %v1504
        %v1599 = vunpack.c.l.b16 %v1505
        %v1600 = vunpack.c.h.b16 %v1505
        %v1601 = vunpack.c.l.b16 %v1506
        %v1602 = vunpack.c.h.b16 %v1506
        %v1603 = vpack.c.b16 %v1539, %v1539
        %v1604 = vpack.c.b16 %v1540, %v1540
        %v1605 = vpack.c.b16 %v1541, %v1541
        %v1606 = vpack.c.b16 %v1542, %v1542
        %v1607 = vpack.c.b16 %v1543, %v1543
        %v1608 = vpack.c.b16 %v1544, %v1544
        %v1609 = vpack.c.b16 %v1545, %v1545
        %v1610 = vpack.c.b16 %v1546, %v1546
        %v1611 = vpack.c.b16 %v1547, %v1547
        %v1612 = vpack.c.b16 %v1548, %v1548
        %v1613 = vpack.c.b16 %v1549, %v1549
        %v1614 = vpack.c.b16 %v1550, %v1550
        %v1615 = vpack.c.b16 %v1551, %v1551
        %v1616 = vpack.c.b16 %v1552, %v1552
        %v1617 = vpack.c.b16 %v1553, %v1553
        %v1618 = vpack.c.b16 %v1554, %v1554
        %v1619 = vpack.c.b16 %v1555, %v1555
        %v1620 = vpack.c.b16 %v1556, %v1556
        %v1621 = vpack.c.b16 %v1557, %v1557
        %v1622 = vpack.c.b16 %v1558, %v1558
        %v1623 = vpack.c.b16 %v1559, %v1559
        %v1624 = vpack.c.b16 %v1560, %v1560
        %v1625 = vpack.c.b16 %v1561, %v1561
        %v1626 = vpack.c.b16 %v1562, %v1562
        %v1627 = vpack.c.b16 %v1563, %v1563
        %v1628 = vpack.c.b16 %v1564, %v1564
        %v1629 = vpack.c.b16 %v1565, %v1565
        %v1630 = vpack.c.b16 %v1566, %v1566
        %v1631 = vpack.c.b16 %v1567, %v1567
        %v1632 = vpack.c.b16 %v1568, %v1568
        %v1633 = vpack.c.b16 %v1569, %v1569
        %v1634 = vpack.c.b16 %v1570, %v1570
        %v1635 = vpack.c.b16 %v1571, %v1571
        %v1636 = vpack.c.b16 %v1572, %v1572
        %v1637 = vpack.c.b16 %v1573, %v1573
        %v1638 = vpack.c.b16 %v1574, %v1574
        %v1639 = vpack.c.b16 %v1575, %v1575
        %v1640 = vpack.c.b16 %v1576, %v1576
        %v1641 = vpack.c.b16 %v1577, %v1577
        %v1642 = vpack.c.b16 %v1578, %v1578
        %v1643 = vpack.c.b16 %v1579, %v1579
        %v1644 = vpack.c.b16 %v1580, %v1580
        %v1645 = vpack.c.b16 %v1581, %v1581
        %v1646 = vpack.c.b16 %v1582, %v1582
        %v1647 = vpack.c.b16 %v1583, %v1583
        %v1648 = vpack.c.b16 %v1584, %v1584
        %v1649 = vpack.c.b16 %v1585, %v1585
        %v1650 = vpack.c.b16 %v1586, %v1586
        %v1651 = vpack.c.b16 %v1587, %v1587
        %v1652 = vpack.c.b16 %v1588, %v1588
        %v1653 = vpack.c.b16 %v1589, %v1589
        %v1654 = vpack.c.b16 %v1590, %v1590
        %v1655 = vpack.c.b16 %v1591, %v1591
        %v1656 = vpack.c.b16 %v1592, %v1592
        %v1657 = vpack.c.b16 %v1593, %v1593
        %v1658 = vpack.c.b16 %v1594, %v1594
        %v1659 = vpack.c.b16 %v1595, %v1595
        %v1660 = vpack.c.b16 %v1596, %v1596
        %v1661 = vpack.c.b16 %v1597, %v1597
        %v1662 = vpack.c.b16 %v1598, %v1598
        %v1663 = vpack.c.b16 %v1599, %v1599
        %v1664 = vpack.c.b16 %v1600, %v1600
        %v1665 = vpack.c.b16 %v1601, %v1601
        %v1666 = vpack.c.b16 %v1602, %v1602
        %1731 = vst [vmem:[%s271] sm:$0xf] %v1603
        %1732 = vst [vmem:[%s271 + $0x4] sm:$0xf] %v1604
        %1733 = vst [vmem:[%s271 + $0x8] sm:$0xf] %v1605
        %1734 = vst [vmem:[%s271 + $0xc] sm:$0xf] %v1606
        %1735 = vst [vmem:[%s271 + $0x10] sm:$0xf] %v1607
        %1736 = vst [vmem:[%s271 + $0x14] sm:$0xf] %v1608
        %1737 = vst [vmem:[%s271 + $0x18] sm:$0xf] %v1609
        %1738 = vst [vmem:[%s271 + $0x1c] sm:$0xf] %v1610
        %1739 = vst [vmem:[%s271 + $0x20] sm:$0xf] %v1611
        %1740 = vst [vmem:[%s271 + $0x24] sm:$0xf] %v1612
        %1741 = vst [vmem:[%s271 + $0x28] sm:$0xf] %v1613
        %1742 = vst [vmem:[%s271 + $0x2c] sm:$0xf] %v1614
        %1743 = vst [vmem:[%s271 + $0x30] sm:$0xf] %v1615
        %1744 = vst [vmem:[%s271 + $0x34] sm:$0xf] %v1616
        %1745 = vst [vmem:[%s271 + $0x38] sm:$0xf] %v1617
        %1746 = vst [vmem:[%s271 + $0x3c] sm:$0xf] %v1618
        %1747 = vst [vmem:[%s271 + $0x40] sm:$0xf] %v1619
        %1748 = vst [vmem:[%s271 + $0x44] sm:$0xf] %v1620
        %1749 = vst [vmem:[%s271 + $0x48] sm:$0xf] %v1621
        %1750 = vst [vmem:[%s271 + $0x4c] sm:$0xf] %v1622
        %1751 = vst [vmem:[%s271 + $0x50] sm:$0xf] %v1623
        %1752 = vst [vmem:[%s271 + $0x54] sm:$0xf] %v1624
        %1753 = vst [vmem:[%s271 + $0x58] sm:$0xf] %v1625
        %1754 = vst [vmem:[%s271 + $0x5c] sm:$0xf] %v1626
        %1755 = vst [vmem:[%s271 + $0x60] sm:$0xf] %v1627
        %1756 = vst [vmem:[%s271 + $0x64] sm:$0xf] %v1628
        %1757 = vst [vmem:[%s271 + $0x68] sm:$0xf] %v1629
        %1758 = vst [vmem:[%s271 + $0x6c] sm:$0xf] %v1630
        %1759 = vst [vmem:[%s271 + $0x70] sm:$0xf] %v1631
        %1760 = vst [vmem:[%s271 + $0x74] sm:$0xf] %v1632
        %1761 = vst [vmem:[%s271 + $0x78] sm:$0xf] %v1633
        %1762 = vst [vmem:[%s271 + $0x7c] sm:$0xf] %v1634
        %1763 = vst [vmem:[%s271 + $0x80] sm:$0xf] %v1635
        %1764 = vst [vmem:[%s271 + $0x84] sm:$0xf] %v1636
        %1765 = vst [vmem:[%s271 + $0x88] sm:$0xf] %v1637
        %1766 = vst [vmem:[%s271 + $0x8c] sm:$0xf] %v1638
        %1767 = vst [vmem:[%s271 + $0x90] sm:$0xf] %v1639
        %1768 = vst [vmem:[%s271 + $0x94] sm:$0xf] %v1640
        %1769 = vst [vmem:[%s271 + $0x98] sm:$0xf] %v1641
        %1770 = vst [vmem:[%s271 + $0x9c] sm:$0xf] %v1642
        %1771 = vst [vmem:[%s271 + $0xa0] sm:$0xf] %v1643
        %1772 = vst [vmem:[%s271 + $0xa4] sm:$0xf] %v1644
        %1773 = vst [vmem:[%s271 + $0xa8] sm:$0xf] %v1645
        %1774 = vst [vmem:[%s271 + $0xac] sm:$0xf] %v1646
        %1775 = vst [vmem:[%s271 + $0xb0] sm:$0xf] %v1647
        %1776 = vst [vmem:[%s271 + $0xb4] sm:$0xf] %v1648
        %1777 = vst [vmem:[%s271 + $0xb8] sm:$0xf] %v1649
        %1778 = vst [vmem:[%s271 + $0xbc] sm:$0xf] %v1650
        %1779 = vst [vmem:[%s271 + $0xc0] sm:$0xf] %v1651
        %1780 = vst [vmem:[%s271 + $0xc4] sm:$0xf] %v1652
        %1781 = vst [vmem:[%s271 + $0xc8] sm:$0xf] %v1653
        %1782 = vst [vmem:[%s271 + $0xcc] sm:$0xf] %v1654
        %1783 = vst [vmem:[%s271 + $0xd0] sm:$0xf] %v1655
        %1784 = vst [vmem:[%s271 + $0xd4] sm:$0xf] %v1656
        %1785 = vst [vmem:[%s271 + $0xd8] sm:$0xf] %v1657
        %1786 = vst [vmem:[%s271 + $0xdc] sm:$0xf] %v1658
        %1787 = vst [vmem:[%s271 + $0xe0] sm:$0xf] %v1659
        %1788 = vst [vmem:[%s271 + $0xe4] sm:$0xf] %v1660
        %1789 = vst [vmem:[%s271 + $0xe8] sm:$0xf] %v1661
        %1790 = vst [vmem:[%s271 + $0xec] sm:$0xf] %v1662
        %1791 = vst [vmem:[%s271 + $0xf0] sm:$0xf] %v1663
        %1792 = vst [vmem:[%s271 + $0xf4] sm:$0xf] %v1664
        %1793 = vst [vmem:[%s271 + $0xf8] sm:$0xf] %v1665
        %1794 = vst [vmem:[%s271 + $0xfc] sm:$0xf] %v1666
        %s1795 = sand.u32 %s141, 1
        %s1796 = scalar_lea.sflag [#allocation4], %s1795
        %s1797 = sand.u32 %s141, 1
        %s1798 = smul.addr %s1797, 256
        %s1799 = scalar_lea.vmem [#allocation8], %s1798
        // Predicated region
        $region53: #{tpu_custom_call.1} parent=39 // pred_check
          %p1800 = pneg %p151
        $region54: #{tpu_custom_call.1} parent=39 // pred_check_branch
          %1802 = sbr.rel (%p1800) target = $region56
        $region55: #{tpu_custom_call.1} parent=39 // pred_region
          %s1803 = smul.u32 64, %s23
          %s1805 = ssub.s32 4096, 4096
          %1806 = vsyncadd %s1796, %s1805
          %s1807 = smul.addr %s1803, 64
          %s1808 = scalar_lea.hbm %s5, %s1807
          %s1809 = sshll.u32 %s1799, 4
          %s1810 = int_to_ptr.vmem [resolvable:$true] %s1809
          %1815 = dma.vmem_to_hbm [thread:$0]  %s1810, 4096, %s1808, %s1796, 64, 64, 4
        $region56: #{tpu_custom_call.1} parent=39 // pred_fallthru
          _
      $region40: #{tpu_custom_call.1} parent=5 // pred_fallthru
        _
      %p1816 = scmp.le.s32.totalorder 2, %s18
      // Predicated region
      $region57: #{tpu_custom_call.1} parent=5 // pred_check
        %p1817 = pneg %p1816
      $region58: #{tpu_custom_call.1} parent=5 // pred_check_branch
        %1819 = sbr.rel (%p1817) target = $region60
      $region59: #{tpu_custom_call.1} parent=5 // pred_region
        %s1820 = ssub.s32 %s18, 2
        // Predicated region
        $region61: #{tpu_custom_call.1} parent=59 // pred_check
          %p1821 = pneg %p157
        $region62: #{tpu_custom_call.1} parent=59 // pred_check_branch
          %1823 = sbr.rel (%p1821) target = $region64
        $region63: #{tpu_custom_call.1} parent=59 // pred_region
          %s1824 = sand.u32 %s142, 1
          %s1825 = scalar_lea.sflag [#allocation4], %s1824
          %s1826 = sand.u32 %s142, 1
          %s1827 = smul.addr %s1826, 256
          %s1828 = scalar_lea.vmem [#allocation8], %s1827
          %1829 = dma.done %s1825, 4096
        $region64: #{tpu_custom_call.1} parent=59 // pred_fallthru
          _
      $region60: #{tpu_custom_call.1} parent=5 // pred_fallthru
        _
    $region6: #{tpu_custom_call.1} parent=1 // loop_footer
      %s22 = sadd.s32 1, %s18
    $region7: #{tpu_custom_call.1} parent=1 // loop_footer_branch
      %17 = sbr.rel target = $region3
    $region8: #{tpu_custom_call.1} parent=1 // loop_exit
      _
    %1830 = vsyncpa [#allocation3], 1
    %s1831 = scalar_lea.sflag [#allocation3], 1
    %1832 = vsyncpa %s1831, 1
    %1833 = vsyncpa [#allocation6], 1
    %1834 = vsyncpa [#allocation4], 1
    %s1835 = scalar_lea.sflag [#allocation4], 1
    %1836 = vsyncpa %s1835, 1

</llo_original>
